<compile_context>
chip_gen: v7x
topology: tpu7x:2x2x1
jax: 0.10.0
libtpu: 0.0.40
codegen_flags: <defaults>
</compile_context>

<pallas_src>
import jax
import jax.numpy as jnp
from jax.experimental import pallas as pl
from jax.experimental.pallas import tpu as pltpu


def _bmm_kernel(a_ref, b_ref, o_ref):
    # a_ref: (gb, M, K), b_ref: (gb, K, N), o_ref: (gb, M, N)
    # One fused batched matmul per grid step; full-slab lane-dense store.
    o_ref[...] = jnp.einsum(
        "gmk,gkn->gmn",
        a_ref[...],
        b_ref[...],
        preferred_element_type=jnp.float32,
    ).astype(o_ref.dtype)


def batched_matmul(a: jax.Array, b: jax.Array) -> jax.Array:
    """Equivalent of torch.matmul(a, b) for a:[B,H,M,K], b:[B,H,K,N]."""
    B, H, M, K = a.shape
    Bb, Hb, Kb, N = b.shape
    assert (B, H, K) == (Bb, Hb, Kb), "shape mismatch"

    G = B * H
    a2 = a.reshape(G, M, K)
    b2 = b.reshape(G, K, N)

    # Use 2 parallel grid steps when possible (v7x has 2 TensorCores);
    # otherwise fall back to a single fused step.  Everything fits in VMEM
    # comfortably at these sizes (~3 MiB total, even double-buffered).
    gb = G // 2 if (G % 2 == 0 and G >= 2) else G
    n_steps = G // gb

    cost = pl.CostEstimate(
        flops=2 * G * M * K * N,
        transcendentals=0,
        bytes_accessed=4 * (G * M * K + G * K * N + G * M * N),
    )

    out = pl.pallas_call(
        _bmm_kernel,
        out_shape=jax.ShapeDtypeStruct((G, M, N), a.dtype),
        grid_spec=pltpu.PrefetchScalarGridSpec(
            num_scalar_prefetch=0,
            grid=(n_steps,),
            in_specs=[
                pl.BlockSpec((gb, M, K), lambda g: (g, 0, 0)),
                pl.BlockSpec((gb, K, N), lambda g: (g, 0, 0)),
            ],
            out_specs=pl.BlockSpec((gb, M, N), lambda g: (g, 0, 0)),
        ),
        compiler_params=pltpu.CompilerParams(
            dimension_semantics=("parallel",)
        ),
        cost_estimate=cost,
    )(a2, b2)

    return out.reshape(B, H, M, N)


if __name__ == "__main__":
    key = jax.random.PRNGKey(0)
    k1, k2 = jax.random.split(key)

    # Shapes consistent with the module: [1, 4, 384, 64] @ [1, 4, 64, 384]
    B, H, M, K, N = 1, 4, 384, 64, 384
    x383 = jax.random.normal(k1, (B, H, M, K), dtype=jnp.float32)
    x384 = jax.random.normal(k2, (B, H, K, N), dtype=jnp.float32)

    out = batched_matmul(x383, x384)
    out = jax.block_until_ready(out)

    # Correctness check against plain JAX reference
    ref = jnp.matmul(x383, x384)
    assert out.shape == (B, H, M, N)
    assert jnp.allclose(out, ref, atol=1e-4, rtol=1e-4)

    print("KERNEL_OK")
</pallas_src>

<mosaic_0001>
module attributes {stable_mosaic.version = 11 : i64} {
  func.func @_bmm_kernel(%arg0: i32, %arg1: memref<2x384x64xf32, #tpu.memory_space<vmem>>, %arg2: memref<2x64x384xf32, #tpu.memory_space<vmem>>, %arg3: memref<2x384x384xf32, #tpu.memory_space<vmem>>) attributes {dimension_semantics = [#tpu.dimension_semantics<parallel>], iteration_bounds = array<i64: 2>, scalar_prefetch = 0 : i64, scratch_operands = 0 : i64, tpu.core_type = #tpu.core_type<tc>, window_params = [{transform_indices = @transform_0, window_bounds = array<i64: 2, 384, 64>}, {transform_indices = @transform_1, window_bounds = array<i64: 2, 64, 384>}, {transform_indices = @transform_2, window_bounds = array<i64: 2, 384, 384>}]} {
    %c0 = arith.constant 0 : index
    %c0_0 = arith.constant 0 : index
    %c0_1 = arith.constant 0 : index
    %0 = vector.load %arg1[%c0, %c0_0, %c0_1] : memref<2x384x64xf32, #tpu.memory_space<vmem>>, vector<2x384x64xf32>
    %c0_2 = arith.constant 0 : index
    %c0_3 = arith.constant 0 : index
    %c0_4 = arith.constant 0 : index
    %1 = vector.load %arg2[%c0_2, %c0_3, %c0_4] : memref<2x64x384xf32, #tpu.memory_space<vmem>>, vector<2x64x384xf32>
    "tpu.trace_start"() <{level = 10 : i32, message = "gmk,gkn->gmn"}> : () -> ()
    %cst = arith.constant dense<0.000000e+00> : vector<2x384x384xf32>
    %2 = tpu.matmul %0, %1, %cst {dimension_numbers = #tpu.dot_dimension_numbers<[2], [1], [1], [2], [0, 0, 0, 1, 1, 2], [0], [0]>} : vector<2x384x64xf32>, vector<2x64x384xf32>, vector<2x384x384xf32> -> vector<2x384x384xf32>
    "tpu.trace_stop"() : () -> ()
    %c0_5 = arith.constant 0 : index
    %c0_6 = arith.constant 0 : index
    %c0_7 = arith.constant 0 : index
    %3 = vector.load %arg3[%c0_5, %c0_6, %c0_7] : memref<2x384x384xf32, #tpu.memory_space<vmem>>, vector<2x384x384xf32>
    tpu.vector_store %arg3[%c0_5, %c0_6, %c0_7], %2 {strides = array<i32>} : memref<2x384x384xf32, #tpu.memory_space<vmem>>, vector<2x384x384xf32>,
    return
  }
  func.func @transform_0(%arg0: i32) -> (i32, i32, i32) {
    %c0_i32 = arith.constant 0 : i32
    %c0_i32_0 = arith.constant 0 : i32
    %c0_i32_1 = arith.constant 0 : i32
    return %arg0, %c0_i32, %c0_i32_0 : i32, i32, i32
  }
  func.func @transform_1(%arg0: i32) -> (i32, i32, i32) {
    %c0_i32 = arith.constant 0 : i32
    %c0_i32_0 = arith.constant 0 : i32
    %c0_i32_1 = arith.constant 0 : i32
    return %arg0, %c0_i32, %c0_i32_0 : i32, i32, i32
  }
  func.func @transform_2(%arg0: i32) -> (i32, i32, i32) {
    %c0_i32 = arith.constant 0 : i32
    %c0_i32_0 = arith.constant 0 : i32
    %c0_i32_1 = arith.constant 0 : i32
    return %arg0, %c0_i32, %c0_i32_0 : i32, i32, i32
  }
}

</mosaic_0001>

<llo_original>
// kernel: tpu_custom_call.1
$region0: #{tpu_custom_call.1}
  #allocation0 [shape = 'u32[]', space=smem, size = 0x4, offset = 0x4, fixed_abs, tag = 'smem constant byte address 0x4 - core index']
  #allocation1 [shape = 'u32[144,128]{1,0:T(1,128)}', space=vmem, size = 0x12000, scoped, tag = 'internal scratch']
  %s0 = inlined_call_operand.vmem [shape: f32[4,384,64], index: 0, kind: input, shape index: {}]
  %s1 = inlined_call_operand.hbm [shape: f32[4,64,384], index: 1, kind: input, shape index: {}]
  %s2 = inlined_call_operand.hbm [shape: f32[4,384,384], index: 2, kind: output, shape index: {}]
  %s3 = sld [smem:[#allocation0]]
  $region45: #{tpu_custom_call.1} parent=0
    _
  %s5 = ssub.s32 1, %s3
  %s6 = scalar_select 0, %s5, %s3
  $region1: #{tpu_custom_call.1} parent=0
    #allocation2 [shape = 'u8[393216]{0}', space=vmem, size = 0x60000, scoped, tag = 'input window, operand 1']
    #allocation3 [shape = 's32[2]{0}', space=sflag, size = 0x8, scoped, tag = 'scoped memory for tpu_custom_call.1']
    #allocation4 [shape = 's32[2]{0}', space=sflag, size = 0x8, scoped, tag = 'scoped memory for tpu_custom_call.1']
    #allocation5 [shape = 'u8[2359296]{0}', space=vmem, size = 0x240000, scoped, tag = 'output window, operand 0']
    %7 = vsyncpa [#allocation3], 0
    %s8 = scalar_lea.sflag [#allocation3], 1
    %9 = vsyncpa %s8, 0
    %10 = vsyncpa [#allocation4], 0
    %s11 = scalar_lea.sflag [#allocation4], 1
    %12 = vsyncpa %s11, 0
    loop: start=0, step=1, limit=4
    $region2: #{tpu_custom_call.1} parent=1 // loop_pre_header
      _
    $region3: #{tpu_custom_call.1} parent=1 // loop_header
      %s14 = sphi 0, %s18
      %p15 = scmp.ge.s32.totalorder %s14, 4
      %s24 = sphi 0, %s26
      %s27 = sphi 0, %s24
      %s28 = sphi 0, %s27
      %s44 = sphi 0, %s28
      %s50 = sphi 0, %s52
      %s53 = sphi 0, %s50
      %s54 = sphi 0, %s53
      %s70 = sphi 0, %s54
      %s76 = sphi 0, %s78
      %s79 = sphi 0, %s76
      %s80 = sphi 0, %s79
      %s96 = sphi 0, %s80
    $region4: #{tpu_custom_call.1} parent=1 // loop_header_branch
      %17 = sbr.rel (%p15) target = $region8
    $region5: #{tpu_custom_call.1} parent=1 // loop_body
      %s19 = ssub.s32 %s14, 1
      %s20 = ssub.s32 %s14, 2
      %s21 = sadd.s32 %s14, 1
      %s22 = ssub.s32 %s14, %s21
      %p23 = scmp.eq.s32.totalorder %s22, 0
      %s25 = sadd.s32 %s24, 1
      %s26 = scalar_select %p23, %s24, %s25
      %p29 = pneg %p23
      %p30 = scmp.eq.s32.totalorder %s14, 1
      %p31 = por %p29, %p30
      %p32 = scmp.ne.s32.totalorder %s24, %s27
      %p33 = scmp.eq.s32.totalorder %s14, 0
      %p34 = por %p32, %p33
      %p35 = scmp.ne.s32.totalorder %s24, %s27
      %p36 = scmp.eq.s32.totalorder %s19, 1
      %p37 = por %p35, %p36
      %p38 = scmp.ne.s32.totalorder %s27, %s28
      %p39 = scmp.eq.s32.totalorder %s19, 0
      %p40 = por %p38, %p39
      %p41 = scmp.ne.s32.totalorder %s27, %s28
      %p42 = scmp.eq.s32.totalorder %s20, 1
      %p43 = por %p41, %p42
      %p45 = scmp.ne.s32.totalorder %s28, %s44
      %p46 = scmp.eq.s32.totalorder %s20, 0
      %p47 = por %p45, %p46
      %s48 = ssub.s32 %s14, %s21
      %p49 = scmp.eq.s32.totalorder %s48, 0
      %s51 = sadd.s32 %s50, 1
      %s52 = scalar_select %p49, %s50, %s51
      %p55 = pneg %p49
      %p56 = scmp.eq.s32.totalorder %s14, 1
      %p57 = por %p55, %p56
      %p58 = scmp.ne.s32.totalorder %s50, %s53
      %p59 = scmp.eq.s32.totalorder %s14, 0
      %p60 = por %p58, %p59
      %p61 = scmp.ne.s32.totalorder %s50, %s53
      %p62 = scmp.eq.s32.totalorder %s19, 1
      %p63 = por %p61, %p62
      %p64 = scmp.ne.s32.totalorder %s53, %s54
      %p65 = scmp.eq.s32.totalorder %s19, 0
      %p66 = por %p64, %p65
      %p67 = scmp.ne.s32.totalorder %s53, %s54
      %p68 = scmp.eq.s32.totalorder %s20, 1
      %p69 = por %p67, %p68
      %p71 = scmp.ne.s32.totalorder %s54, %s70
      %p72 = scmp.eq.s32.totalorder %s20, 0
      %p73 = por %p71, %p72
      %s74 = ssub.s32 %s14, %s21
      %p75 = scmp.eq.s32.totalorder %s74, 0
      %s77 = sadd.s32 %s76, 1
      %s78 = scalar_select %p75, %s76, %s77
      %p81 = pneg %p75
      %p82 = scmp.eq.s32.totalorder %s14, 1
      %p83 = por %p81, %p82
      %p84 = scmp.ne.s32.totalorder %s76, %s79
      %p85 = scmp.eq.s32.totalorder %s14, 0
      %p86 = por %p84, %p85
      %p87 = scmp.ne.s32.totalorder %s76, %s79
      %p88 = scmp.eq.s32.totalorder %s19, 1
      %p89 = por %p87, %p88
      %p90 = scmp.ne.s32.totalorder %s79, %s80
      %p91 = scmp.eq.s32.totalorder %s19, 0
      %p92 = por %p90, %p91
      %p93 = scmp.ne.s32.totalorder %s79, %s80
      %p94 = scmp.eq.s32.totalorder %s20, 1
      %p95 = por %p93, %p94
      %p97 = scmp.ne.s32.totalorder %s80, %s96
      %p98 = scmp.eq.s32.totalorder %s20, 0
      %p99 = por %p97, %p98
      %p100 = scmp.le.s32.totalorder 1, %s14
      %p101 = scmp.lt.s32.totalorder %s14, 3
      %p102 = pnand %p100, %p101
      %p103 = pneg %p102
      // Predicated region
      $region9: #{tpu_custom_call.1} parent=5 // pred_check
        _
      $region10: #{tpu_custom_call.1} parent=5 // pred_check_branch
        %105 = sbr.rel (%p102) target = $region12
      $region11: #{tpu_custom_call.1} parent=5 // pred_region
        %s106 = ssub.s32 %s14, 1
      $region12: #{tpu_custom_call.1} parent=5 // pred_fallthru
        _
      %p107 = scmp.lt.s32.totalorder %s14, 2
      // Predicated region
      $region13: #{tpu_custom_call.1} parent=5 // pred_check
        %p108 = pneg %p107
      $region14: #{tpu_custom_call.1} parent=5 // pred_check_branch
        %110 = sbr.rel (%p108) target = $region16
      $region15: #{tpu_custom_call.1} parent=5 // pred_region
        // Predicated region
        $region17: #{tpu_custom_call.1} parent=15 // pred_check
          %p111 = pneg %p34
        $region18: #{tpu_custom_call.1} parent=15 // pred_check_branch
          %113 = sbr.rel (%p111) target = $region20
        $region19: #{tpu_custom_call.1} parent=15 // pred_region
          %s114 = smul.u32 2, %s14
          %p115 = scmp.lt.s32.totalorder %s114, 3
          %s116 = scalar_select %p115, %s114, 3
          %s117 = smul.addr %s116, 48
          %s118 = smul.addr %s117, 8
          %s119 = scalar_lea.vmem %s0, %s118
          %s120 = smul.u32 2, %s14
        $region20: #{tpu_custom_call.1} parent=15 // pred_fallthru
          _
        // Predicated region
        $region21: #{tpu_custom_call.1} parent=15 // pred_check
          %p121 = pneg %p60
        $region22: #{tpu_custom_call.1} parent=15 // pred_check_branch
          %123 = sbr.rel (%p121) target = $region24
        $region23: #{tpu_custom_call.1} parent=15 // pred_region
          %s124 = sand.u32 %s50, 1
          %s125 = scalar_lea.sflag [#allocation3], %s124
          %s126 = sand.u32 %s50, 1
          %s127 = smul.addr %s126, 384
          %s128 = scalar_lea.vmem [#allocation2], %s127
          %s129 = smul.u32 2, %s14
          %s131 = ssub.s32 6144, 6144
          %132 = vsyncadd %s125, %s131
          %s133 = smul.addr %s129, 24
          %s134 = smul.addr %s133, 128
          %s135 = scalar_lea.hbm %s1, %s134
          %s136 = sshll.u32 %s128, 4
          %s137 = int_to_ptr.vmem [resolvable:$true] %s136
          %142 = dma.hbm_to_vmem [thread:$0]  %s135, 6144, %s137, %s125, 384, 384, 24
        $region24: #{tpu_custom_call.1} parent=15 // pred_fallthru
          _
      $region16: #{tpu_custom_call.1} parent=5 // pred_fallthru
        _
      %p143 = scmp.le.s32.totalorder 1, %s14
      %p144 = scmp.lt.s32.totalorder %s14, 3
      %p145 = pnand %p143, %p144
      %p146 = pneg %p145
      // Predicated region
      $region25: #{tpu_custom_call.1} parent=5 // pred_check
        _
      $region26: #{tpu_custom_call.1} parent=5 // pred_check_branch
        %148 = sbr.rel (%p145) target = $region28
      $region27: #{tpu_custom_call.1} parent=5 // pred_region
        %s149 = ssub.s32 %s14, 1
        %s150 = sand.u32 %s53, 1
        %s151 = scalar_lea.sflag [#allocation3], %s150
        %s152 = sand.u32 %s53, 1
        %s153 = smul.addr %s152, 384
        %s154 = scalar_lea.vmem [#allocation2], %s153
        // Predicated region
        $region29: #{tpu_custom_call.1} parent=27 // pred_check
          %p155 = pneg %p66
        $region30: #{tpu_custom_call.1} parent=27 // pred_check_branch
          %157 = sbr.rel (%p155) target = $region32
        $region31: #{tpu_custom_call.1} parent=27 // pred_region
          %158 = dma.done %s151, 6144
        $region32: #{tpu_custom_call.1} parent=27 // pred_fallthru
          _
        %s159 = smul.u32 2, %s19
        %p160 = scmp.lt.s32.totalorder %s159, 3
        %s161 = scalar_select %p160, %s159, 3
        %s162 = smul.addr %s161, 48
        %s163 = smul.addr %s162, 8
        %s164 = scalar_lea.vmem %s0, %s163
        %p165 = pneg %p40
        %p166 = pneg %p37
        %s167 = sand.u32 %s53, 1
        %s168 = scalar_lea.sflag [#allocation3], %s167
        %s169 = sand.u32 %s53, 1
        %s170 = smul.addr %s169, 384
        %s171 = scalar_lea.vmem [#allocation2], %s170
        %p172 = pneg %p66
        %p173 = pneg %p63
        %p174 = pneg %p92
        %p175 = pneg %p89
        %s176 = sand.u32 %s79, 1
        %s177 = scalar_lea.sflag [#allocation4], %s176
        %s178 = sand.u32 %s79, 1
        %s179 = smul.addr %s178, 2304
        %s180 = scalar_lea.vmem [#allocation5], %s179
        %s181 = smul.u32 2, %s19
        %p182 = scmp.lt.s32.totalorder %s181, 3
        %s183 = scalar_select %p182, %s181, 3
        %s184 = smul.addr %s183, 48
        %s185 = smul.addr %s184, 8
        %s186 = scalar_lea.vmem %s0, %s185
        %s187 = smul.u32 2, %s19
        %s188 = smul.u32 2, %s19
        %s189 = smul.u32 2, %s19
        %v190 = vld [vmem:[%s186] sm:$0xff]
        %v191 = vld [vmem:[%s186 + $0x8] sm:$0xff]
        %v192 = vld [vmem:[%s186 + $0x10] sm:$0xff]
        %v193 = vld [vmem:[%s186 + $0x18] sm:$0xff]
        %v194 = vld [vmem:[%s186 + $0x20] sm:$0xff]
        %v195 = vld [vmem:[%s186 + $0x28] sm:$0xff]
        %v196 = vld [vmem:[%s186 + $0x30] sm:$0xff]
        %v197 = vld [vmem:[%s186 + $0x38] sm:$0xff]
        %v198 = vld [vmem:[%s186 + $0x40] sm:$0xff]
        %v199 = vld [vmem:[%s186 + $0x48] sm:$0xff]
        %v200 = vld [vmem:[%s186 + $0x50] sm:$0xff]
        %v201 = vld [vmem:[%s186 + $0x58] sm:$0xff]
        %v202 = vld [vmem:[%s186 + $0x60] sm:$0xff]
        %v203 = vld [vmem:[%s186 + $0x68] sm:$0xff]
        %v204 = vld [vmem:[%s186 + $0x70] sm:$0xff]
        %v205 = vld [vmem:[%s186 + $0x78] sm:$0xff]
        %v206 = vld [vmem:[%s186 + $0x80] sm:$0xff]
        %v207 = vld [vmem:[%s186 + $0x88] sm:$0xff]
        %v208 = vld [vmem:[%s186 + $0x90] sm:$0xff]
        %v209 = vld [vmem:[%s186 + $0x98] sm:$0xff]
        %v210 = vld [vmem:[%s186 + $0xa0] sm:$0xff]
        %v211 = vld [vmem:[%s186 + $0xa8] sm:$0xff]
        %v212 = vld [vmem:[%s186 + $0xb0] sm:$0xff]
        %v213 = vld [vmem:[%s186 + $0xb8] sm:$0xff]
        %v214 = vld [vmem:[%s186 + $0xc0] sm:$0xff]
        %v215 = vld [vmem:[%s186 + $0xc8] sm:$0xff]
        %v216 = vld [vmem:[%s186 + $0xd0] sm:$0xff]
        %v217 = vld [vmem:[%s186 + $0xd8] sm:$0xff]
        %v218 = vld [vmem:[%s186 + $0xe0] sm:$0xff]
        %v219 = vld [vmem:[%s186 + $0xe8] sm:$0xff]
        %v220 = vld [vmem:[%s186 + $0xf0] sm:$0xff]
        %v221 = vld [vmem:[%s186 + $0xf8] sm:$0xff]
        %v222 = vld [vmem:[%s186 + $0x100] sm:$0xff]
        %v223 = vld [vmem:[%s186 + $0x108] sm:$0xff]
        %v224 = vld [vmem:[%s186 + $0x110] sm:$0xff]
        %v225 = vld [vmem:[%s186 + $0x118] sm:$0xff]
        %v226 = vld [vmem:[%s186 + $0x120] sm:$0xff]
        %v227 = vld [vmem:[%s186 + $0x128] sm:$0xff]
        %v228 = vld [vmem:[%s186 + $0x130] sm:$0xff]
        %v229 = vld [vmem:[%s186 + $0x138] sm:$0xff]
        %v230 = vld [vmem:[%s186 + $0x140] sm:$0xff]
        %v231 = vld [vmem:[%s186 + $0x148] sm:$0xff]
        %v232 = vld [vmem:[%s186 + $0x150] sm:$0xff]
        %v233 = vld [vmem:[%s186 + $0x158] sm:$0xff]
        %v234 = vld [vmem:[%s186 + $0x160] sm:$0xff]
        %v235 = vld [vmem:[%s186 + $0x168] sm:$0xff]
        %v236 = vld [vmem:[%s186 + $0x170] sm:$0xff]
        %v237 = vld [vmem:[%s186 + $0x178] sm:$0xff]
        %v238 = vld [vmem:[%s186 + $0x180] sm:$0xff]
        %v239 = vld [vmem:[%s186 + $0x188] sm:$0xff]
        %v240 = vld [vmem:[%s186 + $0x190] sm:$0xff]
        %v241 = vld [vmem:[%s186 + $0x198] sm:$0xff]
        %v242 = vld [vmem:[%s186 + $0x1a0] sm:$0xff]
        %v243 = vld [vmem:[%s186 + $0x1a8] sm:$0xff]
        %v244 = vld [vmem:[%s186 + $0x1b0] sm:$0xff]
        %v245 = vld [vmem:[%s186 + $0x1b8] sm:$0xff]
        %v246 = vld [vmem:[%s186 + $0x1c0] sm:$0xff]
        %v247 = vld [vmem:[%s186 + $0x1c8] sm:$0xff]
        %v248 = vld [vmem:[%s186 + $0x1d0] sm:$0xff]
        %v249 = vld [vmem:[%s186 + $0x1d8] sm:$0xff]
        %v250 = vld [vmem:[%s186 + $0x1e0] sm:$0xff]
        %v251 = vld [vmem:[%s186 + $0x1e8] sm:$0xff]
        %v252 = vld [vmem:[%s186 + $0x1f0] sm:$0xff]
        %v253 = vld [vmem:[%s186 + $0x1f8] sm:$0xff]
        %v254 = vld [vmem:[%s186 + $0x200] sm:$0xff]
        %v255 = vld [vmem:[%s186 + $0x208] sm:$0xff]
        %v256 = vld [vmem:[%s186 + $0x210] sm:$0xff]
        %v257 = vld [vmem:[%s186 + $0x218] sm:$0xff]
        %v258 = vld [vmem:[%s186 + $0x220] sm:$0xff]
        %v259 = vld [vmem:[%s186 + $0x228] sm:$0xff]
        %v260 = vld [vmem:[%s186 + $0x230] sm:$0xff]
        %v261 = vld [vmem:[%s186 + $0x238] sm:$0xff]
        %v262 = vld [vmem:[%s186 + $0x240] sm:$0xff]
        %v263 = vld [vmem:[%s186 + $0x248] sm:$0xff]
        %v264 = vld [vmem:[%s186 + $0x250] sm:$0xff]
        %v265 = vld [vmem:[%s186 + $0x258] sm:$0xff]
        %v266 = vld [vmem:[%s186 + $0x260] sm:$0xff]
        %v267 = vld [vmem:[%s186 + $0x268] sm:$0xff]
        %v268 = vld [vmem:[%s186 + $0x270] sm:$0xff]
        %v269 = vld [vmem:[%s186 + $0x278] sm:$0xff]
        %v270 = vld [vmem:[%s186 + $0x280] sm:$0xff]
        %v271 = vld [vmem:[%s186 + $0x288] sm:$0xff]
        %v272 = vld [vmem:[%s186 + $0x290] sm:$0xff]
        %v273 = vld [vmem:[%s186 + $0x298] sm:$0xff]
        %v274 = vld [vmem:[%s186 + $0x2a0] sm:$0xff]
        %v275 = vld [vmem:[%s186 + $0x2a8] sm:$0xff]
        %v276 = vld [vmem:[%s186 + $0x2b0] sm:$0xff]
        %v277 = vld [vmem:[%s186 + $0x2b8] sm:$0xff]
        %v278 = vld [vmem:[%s186 + $0x2c0] sm:$0xff]
        %v279 = vld [vmem:[%s186 + $0x2c8] sm:$0xff]
        %v280 = vld [vmem:[%s186 + $0x2d0] sm:$0xff]
        %v281 = vld [vmem:[%s186 + $0x2d8] sm:$0xff]
        %v282 = vld [vmem:[%s186 + $0x2e0] sm:$0xff]
        %v283 = vld [vmem:[%s186 + $0x2e8] sm:$0xff]
        %v284 = vld [vmem:[%s186 + $0x2f0] sm:$0xff]
        %v285 = vld [vmem:[%s186 + $0x2f8] sm:$0xff]
        %v286 = vld [vmem:[%s154] sm:$0xff]
        %v287 = vld [vmem:[%s154 + $0x8] sm:$0xff]
        %v288 = vld [vmem:[%s154 + $0x10] sm:$0xff]
        %v289 = vld [vmem:[%s154 + $0x18] sm:$0xff]
        %v290 = vld [vmem:[%s154 + $0x20] sm:$0xff]
        %v291 = vld [vmem:[%s154 + $0x28] sm:$0xff]
        %v292 = vld [vmem:[%s154 + $0x30] sm:$0xff]
        %v293 = vld [vmem:[%s154 + $0x38] sm:$0xff]
        %v294 = vld [vmem:[%s154 + $0x40] sm:$0xff]
        %v295 = vld [vmem:[%s154 + $0x48] sm:$0xff]
        %v296 = vld [vmem:[%s154 + $0x50] sm:$0xff]
        %v297 = vld [vmem:[%s154 + $0x58] sm:$0xff]
        %v298 = vld [vmem:[%s154 + $0x60] sm:$0xff]
        %v299 = vld [vmem:[%s154 + $0x68] sm:$0xff]
        %v300 = vld [vmem:[%s154 + $0x70] sm:$0xff]
        %v301 = vld [vmem:[%s154 + $0x78] sm:$0xff]
        %v302 = vld [vmem:[%s154 + $0x80] sm:$0xff]
        %v303 = vld [vmem:[%s154 + $0x88] sm:$0xff]
        %v304 = vld [vmem:[%s154 + $0x90] sm:$0xff]
        %v305 = vld [vmem:[%s154 + $0x98] sm:$0xff]
        %v306 = vld [vmem:[%s154 + $0xa0] sm:$0xff]
        %v307 = vld [vmem:[%s154 + $0xa8] sm:$0xff]
        %v308 = vld [vmem:[%s154 + $0xb0] sm:$0xff]
        %v309 = vld [vmem:[%s154 + $0xb8] sm:$0xff]
        %v310 = vld [vmem:[%s154 + $0xc0] sm:$0xff]
        %v311 = vld [vmem:[%s154 + $0xc8] sm:$0xff]
        %v312 = vld [vmem:[%s154 + $0xd0] sm:$0xff]
        %v313 = vld [vmem:[%s154 + $0xd8] sm:$0xff]
        %v314 = vld [vmem:[%s154 + $0xe0] sm:$0xff]
        %v315 = vld [vmem:[%s154 + $0xe8] sm:$0xff]
        %v316 = vld [vmem:[%s154 + $0xf0] sm:$0xff]
        %v317 = vld [vmem:[%s154 + $0xf8] sm:$0xff]
        %v318 = vld [vmem:[%s154 + $0x100] sm:$0xff]
        %v319 = vld [vmem:[%s154 + $0x108] sm:$0xff]
        %v320 = vld [vmem:[%s154 + $0x110] sm:$0xff]
        %v321 = vld [vmem:[%s154 + $0x118] sm:$0xff]
        %v322 = vld [vmem:[%s154 + $0x120] sm:$0xff]
        %v323 = vld [vmem:[%s154 + $0x128] sm:$0xff]
        %v324 = vld [vmem:[%s154 + $0x130] sm:$0xff]
        %v325 = vld [vmem:[%s154 + $0x138] sm:$0xff]
        %v326 = vld [vmem:[%s154 + $0x140] sm:$0xff]
        %v327 = vld [vmem:[%s154 + $0x148] sm:$0xff]
        %v328 = vld [vmem:[%s154 + $0x150] sm:$0xff]
        %v329 = vld [vmem:[%s154 + $0x158] sm:$0xff]
        %v330 = vld [vmem:[%s154 + $0x160] sm:$0xff]
        %v331 = vld [vmem:[%s154 + $0x168] sm:$0xff]
        %v332 = vld [vmem:[%s154 + $0x170] sm:$0xff]
        %v333 = vld [vmem:[%s154 + $0x178] sm:$0xff]
        %vm334 = vcmask 523264
        %v336 = vsel %vm334, %v190, 0
        %v339 = vsel %vm334, %v191, 0
        %v342 = vsel %vm334, %v192, 0
        %v345 = vsel %vm334, %v193, 0
        %v348 = vsel %vm334, %v194, 0
        %v351 = vsel %vm334, %v195, 0
        %v354 = vsel %vm334, %v196, 0
        %v357 = vsel %vm334, %v197, 0
        %v360 = vsel %vm334, %v198, 0
        %v363 = vsel %vm334, %v199, 0
        %v366 = vsel %vm334, %v200, 0
        %v369 = vsel %vm334, %v201, 0
        %v372 = vsel %vm334, %v202, 0
        %v375 = vsel %vm334, %v203, 0
        %v378 = vsel %vm334, %v204, 0
        %v381 = vsel %vm334, %v205, 0
        %v384 = vsel %vm334, %v206, 0
        %v387 = vsel %vm334, %v207, 0
        %v390 = vsel %vm334, %v208, 0
        %v393 = vsel %vm334, %v209, 0
        %v396 = vsel %vm334, %v210, 0
        %v399 = vsel %vm334, %v211, 0
        %v402 = vsel %vm334, %v212, 0
        %v405 = vsel %vm334, %v213, 0
        %v408 = vsel %vm334, %v214, 0
        %v411 = vsel %vm334, %v215, 0
        %v414 = vsel %vm334, %v216, 0
        %v417 = vsel %vm334, %v217, 0
        %v420 = vsel %vm334, %v218, 0
        %v423 = vsel %vm334, %v219, 0
        %v426 = vsel %vm334, %v220, 0
        %v429 = vsel %vm334, %v221, 0
        %v432 = vsel %vm334, %v222, 0
        %v435 = vsel %vm334, %v223, 0
        %v438 = vsel %vm334, %v224, 0
        %v441 = vsel %vm334, %v225, 0
        %v444 = vsel %vm334, %v226, 0
        %v447 = vsel %vm334, %v227, 0
        %v450 = vsel %vm334, %v228, 0
        %v453 = vsel %vm334, %v229, 0
        %v456 = vsel %vm334, %v230, 0
        %v459 = vsel %vm334, %v231, 0
        %v462 = vsel %vm334, %v232, 0
        %v465 = vsel %vm334, %v233, 0
        %v468 = vsel %vm334, %v234, 0
        %v471 = vsel %vm334, %v235, 0
        %v474 = vsel %vm334, %v236, 0
        %v477 = vsel %vm334, %v237, 0
        %479 = vmatprep.subr.mxu0 %v287
        %480 = vmatpush1.msra.mxu0 %v286
        %481 = vmatprep.subr.mxu0 %v290
        %482 = vmatpush1.msra.mxu0 %v289
        %483 = vmatprep.subr.mxu0 %v293
        %484 = vmatpush1.msra.mxu0 %v292
        %485 = vmatprep.subr.mxu0 %v296
        %486 = vmatpush1.msra.mxu0 %v295
        %487 = vmatprep.subr.mxu0 %v299
        %488 = vmatpush1.msra.mxu0 %v298
        %489 = vmatprep.subr.mxu0 %v302
        %490 = vmatpush1.msra.mxu0 %v301
        %491 = vmatprep.subr.mxu0 %v305
        %492 = vmatpush1.msra.mxu0 %v304
        %493 = vmatprep.subr.mxu0 %v308
        %494 = vmatpush1.msra.mxu0 %v307
        %495 = vmatprep.subr.mxu0 0.0
        %496 = vmatpush1.msra.mxu0 0.0
        %497 = vmatprep.subr.mxu0 0.0
        %498 = vmatpush1.msra.mxu0 0.0
        %499 = vmatprep.subr.mxu0 0.0
        %500 = vmatpush1.msra.mxu0 0.0
        %501 = vmatprep.subr.mxu0 0.0
        %502 = vmatpush1.msra.mxu0 0.0
        %503 = vmatprep.subr.mxu0 0.0
        %504 = vmatpush1.msra.mxu0 0.0
        %505 = vmatprep.subr.mxu0 0.0
        %506 = vmatpush1.msra.mxu0 0.0
        %507 = vmatprep.subr.mxu0 0.0
        %508 = vmatpush1.msra.mxu0 0.0
        %509 = vmatprep.subr.mxu0 0.0
        %510 = vmatpush1.msra.mxu0 0.0
        %511 = vmatprep.subr.mxu0 0.0
        %512 = vmatpush1.msra.mxu0 0.0
        %513 = vmatprep.subr.mxu0 0.0
        %514 = vmatpush1.msra.mxu0 0.0
        %515 = vmatprep.subr.mxu0 0.0
        %516 = vmatpush1.msra.mxu0 0.0
        %517 = vmatprep.subr.mxu0 0.0
        %518 = vmatpush1.msra.mxu0 0.0
        %519 = vmatprep.subr.mxu0 0.0
        %520 = vmatpush1.msra.mxu0 0.0
        %521 = vmatprep.subr.mxu0 0.0
        %522 = vmatpush1.msra.mxu0 0.0
        %523 = vmatprep.subr.mxu0 0.0
        %524 = vmatpush1.msra.mxu0 0.0
        %525 = vmatprep.subr.mxu0 0.0
        %526 = vmatpush1.msra.mxu0 0.0
        %527 = vmatprep.subr.mxu0 0.0
        %528 = vmatpush1.msra.mxu0 0.0
        %529 = vmatprep.subr.mxu0 0.0
        %530 = vmatpush1.msra.mxu0 0.0
        %531 = vmatprep.subr.mxu0 0.0
        %532 = vmatpush1.msra.mxu0 0.0
        %533 = vmatprep.subr.mxu0 0.0
        %534 = vmatpush1.msra.mxu0 0.0
        %535 = vmatprep.subr.mxu0 0.0
        %536 = vmatpush1.msra.mxu0 0.0
        %537 = vmatprep.subr.mxu0 0.0
        %538 = vmatpush1.msra.mxu0 0.0
        %539 = vmatprep.subr.mxu0 0.0
        %540 = vmatpush1.msra.mxu0 0.0
        %541 = vmatprep.subr.mxu0 0.0
        %542 = vmatpush1.msra.mxu0 0.0
        %543 = vmatprep.mubr.f32.mxu0 0.0
        %544 = vmatmul.mubr.f32.gmra.mrb[0].mxu0 %v336
        %v545 = vpop.f32.mrb[0].mxu0
        %v546 = vadd.f32 0.0, %v545
        %v547 = vpop.f32.mrb[0].mxu0
        %v548 = vadd.f32 0.0, %v547
        %549 = vmatprep.mubr.f32.mxu0 0.0
        %550 = vmatmul.mubr.f32.gmra.mrb[0].mxu0 %v339
        %v551 = vpop.f32.mrb[0].mxu0
        %v552 = vadd.f32 0.0, %v551
        %v553 = vpop.f32.mrb[0].mxu0
        %v554 = vadd.f32 0.0, %v553
        %555 = vmatprep.mubr.f32.mxu0 0.0
        %556 = vmatmul.mubr.f32.gmra.mrb[0].mxu0 %v342
        %v557 = vpop.f32.mrb[0].mxu0
        %v558 = vadd.f32 0.0, %v557
        %v559 = vpop.f32.mrb[0].mxu0
        %v560 = vadd.f32 0.0, %v559
        %561 = vmatprep.mubr.f32.mxu0 0.0
        %562 = vmatmul.mubr.f32.gmra.mrb[0].mxu0 %v345
        %v563 = vpop.f32.mrb[0].mxu0
        %v564 = vadd.f32 0.0, %v563
        %v565 = vpop.f32.mrb[0].mxu0
        %v566 = vadd.f32 0.0, %v565
        %567 = vmatprep.mubr.f32.mxu0 0.0
        %568 = vmatmul.mubr.f32.gmra.mrb[0].mxu0 %v348
        %v569 = vpop.f32.mrb[0].mxu0
        %v570 = vadd.f32 0.0, %v569
        %v571 = vpop.f32.mrb[0].mxu0
        %v572 = vadd.f32 0.0, %v571
        %573 = vmatprep.mubr.f32.mxu0 0.0
        %574 = vmatmul.mubr.f32.gmra.mrb[0].mxu0 %v351
        %v575 = vpop.f32.mrb[0].mxu0
        %v576 = vadd.f32 0.0, %v575
        %v577 = vpop.f32.mrb[0].mxu0
        %v578 = vadd.f32 0.0, %v577
        %579 = vmatprep.mubr.f32.mxu0 0.0
        %580 = vmatmul.mubr.f32.gmra.mrb[0].mxu0 %v354
        %v581 = vpop.f32.mrb[0].mxu0
        %v582 = vadd.f32 0.0, %v581
        %v583 = vpop.f32.mrb[0].mxu0
        %v584 = vadd.f32 0.0, %v583
        %585 = vmatprep.mubr.f32.mxu0 0.0
        %586 = vmatmul.mubr.f32.gmra.mrb[0].mxu0 %v357
        %v587 = vpop.f32.mrb[0].mxu0
        %v588 = vadd.f32 0.0, %v587
        %v589 = vpop.f32.mrb[0].mxu0
        %v590 = vadd.f32 0.0, %v589
        %591 = vmatprep.mubr.f32.mxu0 0.0
        %592 = vmatmul.mubr.f32.gmra.mrb[0].mxu0 %v360
        %v593 = vpop.f32.mrb[0].mxu0
        %v594 = vadd.f32 0.0, %v593
        %v595 = vpop.f32.mrb[0].mxu0
        %v596 = vadd.f32 0.0, %v595
        %597 = vmatprep.mubr.f32.mxu0 0.0
        %598 = vmatmul.mubr.f32.gmra.mrb[0].mxu0 %v363
        %v599 = vpop.f32.mrb[0].mxu0
        %v600 = vadd.f32 0.0, %v599
        %v601 = vpop.f32.mrb[0].mxu0
        %v602 = vadd.f32 0.0, %v601
        %603 = vmatprep.mubr.f32.mxu0 0.0
        %604 = vmatmul.mubr.f32.gmra.mrb[0].mxu0 %v366
        %v605 = vpop.f32.mrb[0].mxu0
        %v606 = vadd.f32 0.0, %v605
        %v607 = vpop.f32.mrb[0].mxu0
        %v608 = vadd.f32 0.0, %v607
        %609 = vmatprep.mubr.f32.mxu0 0.0
        %610 = vmatmul.mubr.f32.gmra.mrb[0].mxu0 %v369
        %v611 = vpop.f32.mrb[0].mxu0
        %v612 = vadd.f32 0.0, %v611
        %v613 = vpop.f32.mrb[0].mxu0
        %v614 = vadd.f32 0.0, %v613
        %615 = vmatprep.mubr.f32.mxu0 0.0
        %616 = vmatmul.mubr.f32.gmra.mrb[0].mxu0 %v372
        %v617 = vpop.f32.mrb[0].mxu0
        %v618 = vadd.f32 0.0, %v617
        %v619 = vpop.f32.mrb[0].mxu0
        %v620 = vadd.f32 0.0, %v619
        %621 = vmatprep.mubr.f32.mxu0 0.0
        %622 = vmatmul.mubr.f32.gmra.mrb[0].mxu0 %v375
        %v623 = vpop.f32.mrb[0].mxu0
        %v624 = vadd.f32 0.0, %v623
        %v625 = vpop.f32.mrb[0].mxu0
        %v626 = vadd.f32 0.0, %v625
        %627 = vmatprep.mubr.f32.mxu0 0.0
        %628 = vmatmul.mubr.f32.gmra.mrb[0].mxu0 %v378
        %v629 = vpop.f32.mrb[0].mxu0
        %v630 = vadd.f32 0.0, %v629
        %v631 = vpop.f32.mrb[0].mxu0
        %v632 = vadd.f32 0.0, %v631
        %633 = vmatprep.mubr.f32.mxu0 0.0
        %634 = vmatmul.mubr.f32.gmra.mrb[0].mxu0 %v381
        %v635 = vpop.f32.mrb[0].mxu0
        %v636 = vadd.f32 0.0, %v635
        %v637 = vpop.f32.mrb[0].mxu0
        %v638 = vadd.f32 0.0, %v637
        %639 = vmatprep.mubr.f32.mxu0 0.0
        %640 = vmatmul.mubr.f32.gmra.mrb[0].mxu0 %v384
        %v641 = vpop.f32.mrb[0].mxu0
        %v642 = vadd.f32 0.0, %v641
        %v643 = vpop.f32.mrb[0].mxu0
        %v644 = vadd.f32 0.0, %v643
        %645 = vmatprep.mubr.f32.mxu0 0.0
        %646 = vmatmul.mubr.f32.gmra.mrb[0].mxu0 %v387
        %v647 = vpop.f32.mrb[0].mxu0
        %v648 = vadd.f32 0.0, %v647
        %v649 = vpop.f32.mrb[0].mxu0
        %v650 = vadd.f32 0.0, %v649
        %651 = vmatprep.mubr.f32.mxu0 0.0
        %652 = vmatmul.mubr.f32.gmra.mrb[0].mxu0 %v390
        %v653 = vpop.f32.mrb[0].mxu0
        %v654 = vadd.f32 0.0, %v653
        %v655 = vpop.f32.mrb[0].mxu0
        %v656 = vadd.f32 0.0, %v655
        %657 = vmatprep.mubr.f32.mxu0 0.0
        %658 = vmatmul.mubr.f32.gmra.mrb[0].mxu0 %v393
        %v659 = vpop.f32.mrb[0].mxu0
        %v660 = vadd.f32 0.0, %v659
        %v661 = vpop.f32.mrb[0].mxu0
        %v662 = vadd.f32 0.0, %v661
        %663 = vmatprep.mubr.f32.mxu0 0.0
        %664 = vmatmul.mubr.f32.gmra.mrb[0].mxu0 %v396
        %v665 = vpop.f32.mrb[0].mxu0
        %v666 = vadd.f32 0.0, %v665
        %v667 = vpop.f32.mrb[0].mxu0
        %v668 = vadd.f32 0.0, %v667
        %669 = vmatprep.mubr.f32.mxu0 0.0
        %670 = vmatmul.mubr.f32.gmra.mrb[0].mxu0 %v399
        %v671 = vpop.f32.mrb[0].mxu0
        %v672 = vadd.f32 0.0, %v671
        %v673 = vpop.f32.mrb[0].mxu0
        %v674 = vadd.f32 0.0, %v673
        %675 = vmatprep.mubr.f32.mxu0 0.0
        %676 = vmatmul.mubr.f32.gmra.mrb[0].mxu0 %v402
        %v677 = vpop.f32.mrb[0].mxu0
        %v678 = vadd.f32 0.0, %v677
        %v679 = vpop.f32.mrb[0].mxu0
        %v680 = vadd.f32 0.0, %v679
        %681 = vmatprep.mubr.f32.mxu0 0.0
        %682 = vmatmul.mubr.f32.gmra.mrb[0].mxu0 %v405
        %v683 = vpop.f32.mrb[0].mxu0
        %v684 = vadd.f32 0.0, %v683
        %v685 = vpop.f32.mrb[0].mxu0
        %v686 = vadd.f32 0.0, %v685
        %687 = vmatprep.mubr.f32.mxu0 0.0
        %688 = vmatmul.mubr.f32.gmra.mrb[0].mxu0 %v408
        %v689 = vpop.f32.mrb[0].mxu0
        %v690 = vadd.f32 0.0, %v689
        %v691 = vpop.f32.mrb[0].mxu0
        %v692 = vadd.f32 0.0, %v691
        %693 = vmatprep.mubr.f32.mxu0 0.0
        %694 = vmatmul.mubr.f32.gmra.mrb[0].mxu0 %v411
        %v695 = vpop.f32.mrb[0].mxu0
        %v696 = vadd.f32 0.0, %v695
        %v697 = vpop.f32.mrb[0].mxu0
        %v698 = vadd.f32 0.0, %v697
        %699 = vmatprep.mubr.f32.mxu0 0.0
        %700 = vmatmul.mubr.f32.gmra.mrb[0].mxu0 %v414
        %v701 = vpop.f32.mrb[0].mxu0
        %v702 = vadd.f32 0.0, %v701
        %v703 = vpop.f32.mrb[0].mxu0
        %v704 = vadd.f32 0.0, %v703
        %705 = vmatprep.mubr.f32.mxu0 0.0
        %706 = vmatmul.mubr.f32.gmra.mrb[0].mxu0 %v417
        %v707 = vpop.f32.mrb[0].mxu0
        %v708 = vadd.f32 0.0, %v707
        %v709 = vpop.f32.mrb[0].mxu0
        %v710 = vadd.f32 0.0, %v709
        %711 = vmatprep.mubr.f32.mxu0 0.0
        %712 = vmatmul.mubr.f32.gmra.mrb[0].mxu0 %v420
        %v713 = vpop.f32.mrb[0].mxu0
        %v714 = vadd.f32 0.0, %v713
        %v715 = vpop.f32.mrb[0].mxu0
        %v716 = vadd.f32 0.0, %v715
        %717 = vmatprep.mubr.f32.mxu0 0.0
        %718 = vmatmul.mubr.f32.gmra.mrb[0].mxu0 %v423
        %v719 = vpop.f32.mrb[0].mxu0
        %v720 = vadd.f32 0.0, %v719
        %v721 = vpop.f32.mrb[0].mxu0
        %v722 = vadd.f32 0.0, %v721
        %723 = vmatprep.mubr.f32.mxu0 0.0
        %724 = vmatmul.mubr.f32.gmra.mrb[0].mxu0 %v426
        %v725 = vpop.f32.mrb[0].mxu0
        %v726 = vadd.f32 0.0, %v725
        %v727 = vpop.f32.mrb[0].mxu0
        %v728 = vadd.f32 0.0, %v727
        %729 = vmatprep.mubr.f32.mxu0 0.0
        %730 = vmatmul.mubr.f32.gmra.mrb[0].mxu0 %v429
        %v731 = vpop.f32.mrb[0].mxu0
        %v732 = vadd.f32 0.0, %v731
        %v733 = vpop.f32.mrb[0].mxu0
        %v734 = vadd.f32 0.0, %v733
        %735 = vmatprep.mubr.f32.mxu0 0.0
        %736 = vmatmul.mubr.f32.gmra.mrb[0].mxu0 %v432
        %v737 = vpop.f32.mrb[0].mxu0
        %v738 = vadd.f32 0.0, %v737
        %v739 = vpop.f32.mrb[0].mxu0
        %v740 = vadd.f32 0.0, %v739
        %741 = vmatprep.mubr.f32.mxu0 0.0
        %742 = vmatmul.mubr.f32.gmra.mrb[0].mxu0 %v435
        %v743 = vpop.f32.mrb[0].mxu0
        %v744 = vadd.f32 0.0, %v743
        %v745 = vpop.f32.mrb[0].mxu0
        %v746 = vadd.f32 0.0, %v745
        %747 = vmatprep.mubr.f32.mxu0 0.0
        %748 = vmatmul.mubr.f32.gmra.mrb[0].mxu0 %v438
        %v749 = vpop.f32.mrb[0].mxu0
        %v750 = vadd.f32 0.0, %v749
        %v751 = vpop.f32.mrb[0].mxu0
        %v752 = vadd.f32 0.0, %v751
        %753 = vmatprep.mubr.f32.mxu0 0.0
        %754 = vmatmul.mubr.f32.gmra.mrb[0].mxu0 %v441
        %v755 = vpop.f32.mrb[0].mxu0
        %v756 = vadd.f32 0.0, %v755
        %v757 = vpop.f32.mrb[0].mxu0
        %v758 = vadd.f32 0.0, %v757
        %759 = vmatprep.mubr.f32.mxu0 0.0
        %760 = vmatmul.mubr.f32.gmra.mrb[0].mxu0 %v444
        %v761 = vpop.f32.mrb[0].mxu0
        %v762 = vadd.f32 0.0, %v761
        %v763 = vpop.f32.mrb[0].mxu0
        %v764 = vadd.f32 0.0, %v763
        %765 = vmatprep.mubr.f32.mxu0 0.0
        %766 = vmatmul.mubr.f32.gmra.mrb[0].mxu0 %v447
        %v767 = vpop.f32.mrb[0].mxu0
        %v768 = vadd.f32 0.0, %v767
        %v769 = vpop.f32.mrb[0].mxu0
        %v770 = vadd.f32 0.0, %v769
        %771 = vmatprep.mubr.f32.mxu0 0.0
        %772 = vmatmul.mubr.f32.gmra.mrb[0].mxu0 %v450
        %v773 = vpop.f32.mrb[0].mxu0
        %v774 = vadd.f32 0.0, %v773
        %v775 = vpop.f32.mrb[0].mxu0
        %v776 = vadd.f32 0.0, %v775
        %777 = vmatprep.mubr.f32.mxu0 0.0
        %778 = vmatmul.mubr.f32.gmra.mrb[0].mxu0 %v453
        %v779 = vpop.f32.mrb[0].mxu0
        %v780 = vadd.f32 0.0, %v779
        %v781 = vpop.f32.mrb[0].mxu0
        %v782 = vadd.f32 0.0, %v781
        %783 = vmatprep.mubr.f32.mxu0 0.0
        %784 = vmatmul.mubr.f32.gmra.mrb[0].mxu0 %v456
        %v785 = vpop.f32.mrb[0].mxu0
        %v786 = vadd.f32 0.0, %v785
        %v787 = vpop.f32.mrb[0].mxu0
        %v788 = vadd.f32 0.0, %v787
        %789 = vmatprep.mubr.f32.mxu0 0.0
        %790 = vmatmul.mubr.f32.gmra.mrb[0].mxu0 %v459
        %v791 = vpop.f32.mrb[0].mxu0
        %v792 = vadd.f32 0.0, %v791
        %v793 = vpop.f32.mrb[0].mxu0
        %v794 = vadd.f32 0.0, %v793
        %795 = vmatprep.mubr.f32.mxu0 0.0
        %796 = vmatmul.mubr.f32.gmra.mrb[0].mxu0 %v462
        %v797 = vpop.f32.mrb[0].mxu0
        %v798 = vadd.f32 0.0, %v797
        %v799 = vpop.f32.mrb[0].mxu0
        %v800 = vadd.f32 0.0, %v799
        %801 = vmatprep.mubr.f32.mxu0 0.0
        %802 = vmatmul.mubr.f32.gmra.mrb[0].mxu0 %v465
        %v803 = vpop.f32.mrb[0].mxu0
        %v804 = vadd.f32 0.0, %v803
        %v805 = vpop.f32.mrb[0].mxu0
        %v806 = vadd.f32 0.0, %v805
        %807 = vmatprep.mubr.f32.mxu0 0.0
        %808 = vmatmul.mubr.f32.gmra.mrb[0].mxu0 %v468
        %v809 = vpop.f32.mrb[0].mxu0
        %v810 = vadd.f32 0.0, %v809
        %v811 = vpop.f32.mrb[0].mxu0
        %v812 = vadd.f32 0.0, %v811
        %813 = vmatprep.mubr.f32.mxu0 0.0
        %814 = vmatmul.mubr.f32.gmra.mrb[0].mxu0 %v471
        %v815 = vpop.f32.mrb[0].mxu0
        %v816 = vadd.f32 0.0, %v815
        %v817 = vpop.f32.mrb[0].mxu0
        %v818 = vadd.f32 0.0, %v817
        %819 = vmatprep.mubr.f32.mxu0 0.0
        %820 = vmatmul.mubr.f32.gmra.mrb[0].mxu0 %v474
        %v821 = vpop.f32.mrb[0].mxu0
        %v822 = vadd.f32 0.0, %v821
        %v823 = vpop.f32.mrb[0].mxu0
        %v824 = vadd.f32 0.0, %v823
        %825 = vmatprep.mubr.f32.mxu0 0.0
        %826 = vmatmul.mubr.f32.gmra.mrb[0].mxu0 %v477
        %v827 = vpop.f32.mrb[0].mxu0
        %v828 = vadd.f32 0.0, %v827
        %v829 = vpop.f32.mrb[0].mxu0
        %v830 = vadd.f32 0.0, %v829
        %831 = vdwg.mxu0
        %832 = vmatprep.subr.mxu0 0.0
        %833 = vmatpush1.msra.mxu0 %v288
        %834 = vmatprep.subr.mxu0 0.0
        %835 = vmatpush1.msra.mxu0 %v291
        %836 = vmatprep.subr.mxu0 0.0
        %837 = vmatpush1.msra.mxu0 %v294
        %838 = vmatprep.subr.mxu0 0.0
        %839 = vmatpush1.msra.mxu0 %v297
        %840 = vmatprep.subr.mxu0 0.0
        %841 = vmatpush1.msra.mxu0 %v300
        %842 = vmatprep.subr.mxu0 0.0
        %843 = vmatpush1.msra.mxu0 %v303
        %844 = vmatprep.subr.mxu0 0.0
        %845 = vmatpush1.msra.mxu0 %v306
        %846 = vmatprep.subr.mxu0 0.0
        %847 = vmatpush1.msra.mxu0 %v309
        %848 = vmatprep.subr.mxu0 0.0
        %849 = vmatpush1.msra.mxu0 0.0
        %850 = vmatprep.subr.mxu0 0.0
        %851 = vmatpush1.msra.mxu0 0.0
        %852 = vmatprep.subr.mxu0 0.0
        %853 = vmatpush1.msra.mxu0 0.0
        %854 = vmatprep.subr.mxu0 0.0
        %855 = vmatpush1.msra.mxu0 0.0
        %856 = vmatprep.subr.mxu0 0.0
        %857 = vmatpush1.msra.mxu0 0.0
        %858 = vmatprep.subr.mxu0 0.0
        %859 = vmatpush1.msra.mxu0 0.0
        %860 = vmatprep.subr.mxu0 0.0
        %861 = vmatpush1.msra.mxu0 0.0
        %862 = vmatprep.subr.mxu0 0.0
        %863 = vmatpush1.msra.mxu0 0.0
        %864 = vmatprep.subr.mxu0 0.0
        %865 = vmatpush1.msra.mxu0 0.0
        %866 = vmatprep.subr.mxu0 0.0
        %867 = vmatpush1.msra.mxu0 0.0
        %868 = vmatprep.subr.mxu0 0.0
        %869 = vmatpush1.msra.mxu0 0.0
        %870 = vmatprep.subr.mxu0 0.0
        %871 = vmatpush1.msra.mxu0 0.0
        %872 = vmatprep.subr.mxu0 0.0
        %873 = vmatpush1.msra.mxu0 0.0
        %874 = vmatprep.subr.mxu0 0.0
        %875 = vmatpush1.msra.mxu0 0.0
        %876 = vmatprep.subr.mxu0 0.0
        %877 = vmatpush1.msra.mxu0 0.0
        %878 = vmatprep.subr.mxu0 0.0
        %879 = vmatpush1.msra.mxu0 0.0
        %880 = vmatprep.subr.mxu0 0.0
        %881 = vmatpush1.msra.mxu0 0.0
        %882 = vmatprep.subr.mxu0 0.0
        %883 = vmatpush1.msra.mxu0 0.0
        %884 = vmatprep.subr.mxu0 0.0
        %885 = vmatpush1.msra.mxu0 0.0
        %886 = vmatprep.subr.mxu0 0.0
        %887 = vmatpush1.msra.mxu0 0.0
        %888 = vmatprep.subr.mxu0 0.0
        %889 = vmatpush1.msra.mxu0 0.0
        %890 = vmatprep.subr.mxu0 0.0
        %891 = vmatpush1.msra.mxu0 0.0
        %892 = vmatprep.subr.mxu0 0.0
        %893 = vmatpush1.msra.mxu0 0.0
        %894 = vmatprep.subr.mxu0 0.0
        %895 = vmatpush1.msra.mxu0 0.0
        %896 = vmatprep.mubr.f32.mxu0 0.0
        %897 = vmatmul.mubr.f32.gmra.mrb[0].mxu0 %v336
        %v898 = vpop.f32.mrb[0].mxu0
        %v899 = vadd.f32 0.0, %v898
        %v900 = vpop.f32.mrb[0].mxu0
        %901 = vmatprep.mubr.f32.mxu0 0.0
        %902 = vmatmul.mubr.f32.gmra.mrb[0].mxu0 %v339
        %v903 = vpop.f32.mrb[0].mxu0
        %v904 = vadd.f32 0.0, %v903
        %v905 = vpop.f32.mrb[0].mxu0
        %906 = vmatprep.mubr.f32.mxu0 0.0
        %907 = vmatmul.mubr.f32.gmra.mrb[0].mxu0 %v342
        %v908 = vpop.f32.mrb[0].mxu0
        %v909 = vadd.f32 0.0, %v908
        %v910 = vpop.f32.mrb[0].mxu0
        %911 = vmatprep.mubr.f32.mxu0 0.0
        %912 = vmatmul.mubr.f32.gmra.mrb[0].mxu0 %v345
        %v913 = vpop.f32.mrb[0].mxu0
        %v914 = vadd.f32 0.0, %v913
        %v915 = vpop.f32.mrb[0].mxu0
        %916 = vmatprep.mubr.f32.mxu0 0.0
        %917 = vmatmul.mubr.f32.gmra.mrb[0].mxu0 %v348
        %v918 = vpop.f32.mrb[0].mxu0
        %v919 = vadd.f32 0.0, %v918
        %v920 = vpop.f32.mrb[0].mxu0
        %921 = vmatprep.mubr.f32.mxu0 0.0
        %922 = vmatmul.mubr.f32.gmra.mrb[0].mxu0 %v351
        %v923 = vpop.f32.mrb[0].mxu0
        %v924 = vadd.f32 0.0, %v923
        %v925 = vpop.f32.mrb[0].mxu0
        %926 = vmatprep.mubr.f32.mxu0 0.0
        %927 = vmatmul.mubr.f32.gmra.mrb[0].mxu0 %v354
        %v928 = vpop.f32.mrb[0].mxu0
        %v929 = vadd.f32 0.0, %v928
        %v930 = vpop.f32.mrb[0].mxu0
        %931 = vmatprep.mubr.f32.mxu0 0.0
        %932 = vmatmul.mubr.f32.gmra.mrb[0].mxu0 %v357
        %v933 = vpop.f32.mrb[0].mxu0
        %v934 = vadd.f32 0.0, %v933
        %v935 = vpop.f32.mrb[0].mxu0
        %936 = vmatprep.mubr.f32.mxu0 0.0
        %937 = vmatmul.mubr.f32.gmra.mrb[0].mxu0 %v360
        %v938 = vpop.f32.mrb[0].mxu0
        %v939 = vadd.f32 0.0, %v938
        %v940 = vpop.f32.mrb[0].mxu0
        %941 = vmatprep.mubr.f32.mxu0 0.0
        %942 = vmatmul.mubr.f32.gmra.mrb[0].mxu0 %v363
        %v943 = vpop.f32.mrb[0].mxu0
        %v944 = vadd.f32 0.0, %v943
        %v945 = vpop.f32.mrb[0].mxu0
        %946 = vmatprep.mubr.f32.mxu0 0.0
        %947 = vmatmul.mubr.f32.gmra.mrb[0].mxu0 %v366
        %v948 = vpop.f32.mrb[0].mxu0
        %v949 = vadd.f32 0.0, %v948
        %v950 = vpop.f32.mrb[0].mxu0
        %951 = vmatprep.mubr.f32.mxu0 0.0
        %952 = vmatmul.mubr.f32.gmra.mrb[0].mxu0 %v369
        %v953 = vpop.f32.mrb[0].mxu0
        %v954 = vadd.f32 0.0, %v953
        %v955 = vpop.f32.mrb[0].mxu0
        %956 = vmatprep.mubr.f32.mxu0 0.0
        %957 = vmatmul.mubr.f32.gmra.mrb[0].mxu0 %v372
        %v958 = vpop.f32.mrb[0].mxu0
        %v959 = vadd.f32 0.0, %v958
        %v960 = vpop.f32.mrb[0].mxu0
        %961 = vmatprep.mubr.f32.mxu0 0.0
        %962 = vmatmul.mubr.f32.gmra.mrb[0].mxu0 %v375
        %v963 = vpop.f32.mrb[0].mxu0
        %v964 = vadd.f32 0.0, %v963
        %v965 = vpop.f32.mrb[0].mxu0
        %966 = vmatprep.mubr.f32.mxu0 0.0
        %967 = vmatmul.mubr.f32.gmra.mrb[0].mxu0 %v378
        %v968 = vpop.f32.mrb[0].mxu0
        %v969 = vadd.f32 0.0, %v968
        %v970 = vpop.f32.mrb[0].mxu0
        %971 = vmatprep.mubr.f32.mxu0 0.0
        %972 = vmatmul.mubr.f32.gmra.mrb[0].mxu0 %v381
        %v973 = vpop.f32.mrb[0].mxu0
        %v974 = vadd.f32 0.0, %v973
        %v975 = vpop.f32.mrb[0].mxu0
        %976 = vmatprep.mubr.f32.mxu0 0.0
        %977 = vmatmul.mubr.f32.gmra.mrb[0].mxu0 %v384
        %v978 = vpop.f32.mrb[0].mxu0
        %v979 = vadd.f32 0.0, %v978
        %v980 = vpop.f32.mrb[0].mxu0
        %981 = vmatprep.mubr.f32.mxu0 0.0
        %982 = vmatmul.mubr.f32.gmra.mrb[0].mxu0 %v387
        %v983 = vpop.f32.mrb[0].mxu0
        %v984 = vadd.f32 0.0, %v983
        %v985 = vpop.f32.mrb[0].mxu0
        %986 = vmatprep.mubr.f32.mxu0 0.0
        %987 = vmatmul.mubr.f32.gmra.mrb[0].mxu0 %v390
        %v988 = vpop.f32.mrb[0].mxu0
        %v989 = vadd.f32 0.0, %v988
        %v990 = vpop.f32.mrb[0].mxu0
        %991 = vmatprep.mubr.f32.mxu0 0.0
        %992 = vmatmul.mubr.f32.gmra.mrb[0].mxu0 %v393
        %v993 = vpop.f32.mrb[0].mxu0
        %v994 = vadd.f32 0.0, %v993
        %v995 = vpop.f32.mrb[0].mxu0
        %996 = vmatprep.mubr.f32.mxu0 0.0
        %997 = vmatmul.mubr.f32.gmra.mrb[0].mxu0 %v396
        %v998 = vpop.f32.mrb[0].mxu0
        %v999 = vadd.f32 0.0, %v998
        %v1000 = vpop.f32.mrb[0].mxu0
        %1001 = vmatprep.mubr.f32.mxu0 0.0
        %1002 = vmatmul.mubr.f32.gmra.mrb[0].mxu0 %v399
        %v1003 = vpop.f32.mrb[0].mxu0
        %v1004 = vadd.f32 0.0, %v1003
        %v1005 = vpop.f32.mrb[0].mxu0
        %1006 = vmatprep.mubr.f32.mxu0 0.0
        %1007 = vmatmul.mubr.f32.gmra.mrb[0].mxu0 %v402
        %v1008 = vpop.f32.mrb[0].mxu0
        %v1009 = vadd.f32 0.0, %v1008
        %v1010 = vpop.f32.mrb[0].mxu0
        %1011 = vmatprep.mubr.f32.mxu0 0.0
        %1012 = vmatmul.mubr.f32.gmra.mrb[0].mxu0 %v405
        %v1013 = vpop.f32.mrb[0].mxu0
        %v1014 = vadd.f32 0.0, %v1013
        %v1015 = vpop.f32.mrb[0].mxu0
        %1016 = vmatprep.mubr.f32.mxu0 0.0
        %1017 = vmatmul.mubr.f32.gmra.mrb[0].mxu0 %v408
        %v1018 = vpop.f32.mrb[0].mxu0
        %v1019 = vadd.f32 0.0, %v1018
        %v1020 = vpop.f32.mrb[0].mxu0
        %1021 = vmatprep.mubr.f32.mxu0 0.0
        %1022 = vmatmul.mubr.f32.gmra.mrb[0].mxu0 %v411
        %v1023 = vpop.f32.mrb[0].mxu0
        %v1024 = vadd.f32 0.0, %v1023
        %v1025 = vpop.f32.mrb[0].mxu0
        %1026 = vmatprep.mubr.f32.mxu0 0.0
        %1027 = vmatmul.mubr.f32.gmra.mrb[0].mxu0 %v414
        %v1028 = vpop.f32.mrb[0].mxu0
        %v1029 = vadd.f32 0.0, %v1028
        %v1030 = vpop.f32.mrb[0].mxu0
        %1031 = vmatprep.mubr.f32.mxu0 0.0
        %1032 = vmatmul.mubr.f32.gmra.mrb[0].mxu0 %v417
        %v1033 = vpop.f32.mrb[0].mxu0
        %v1034 = vadd.f32 0.0, %v1033
        %v1035 = vpop.f32.mrb[0].mxu0
        %1036 = vmatprep.mubr.f32.mxu0 0.0
        %1037 = vmatmul.mubr.f32.gmra.mrb[0].mxu0 %v420
        %v1038 = vpop.f32.mrb[0].mxu0
        %v1039 = vadd.f32 0.0, %v1038
        %v1040 = vpop.f32.mrb[0].mxu0
        %1041 = vmatprep.mubr.f32.mxu0 0.0
        %1042 = vmatmul.mubr.f32.gmra.mrb[0].mxu0 %v423
        %v1043 = vpop.f32.mrb[0].mxu0
        %v1044 = vadd.f32 0.0, %v1043
        %v1045 = vpop.f32.mrb[0].mxu0
        %1046 = vmatprep.mubr.f32.mxu0 0.0
        %1047 = vmatmul.mubr.f32.gmra.mrb[0].mxu0 %v426
        %v1048 = vpop.f32.mrb[0].mxu0
        %v1049 = vadd.f32 0.0, %v1048
        %v1050 = vpop.f32.mrb[0].mxu0
        %1051 = vmatprep.mubr.f32.mxu0 0.0
        %1052 = vmatmul.mubr.f32.gmra.mrb[0].mxu0 %v429
        %v1053 = vpop.f32.mrb[0].mxu0
        %v1054 = vadd.f32 0.0, %v1053
        %v1055 = vpop.f32.mrb[0].mxu0
        %1056 = vmatprep.mubr.f32.mxu0 0.0
        %1057 = vmatmul.mubr.f32.gmra.mrb[0].mxu0 %v432
        %v1058 = vpop.f32.mrb[0].mxu0
        %v1059 = vadd.f32 0.0, %v1058
        %v1060 = vpop.f32.mrb[0].mxu0
        %1061 = vmatprep.mubr.f32.mxu0 0.0
        %1062 = vmatmul.mubr.f32.gmra.mrb[0].mxu0 %v435
        %v1063 = vpop.f32.mrb[0].mxu0
        %v1064 = vadd.f32 0.0, %v1063
        %v1065 = vpop.f32.mrb[0].mxu0
        %1066 = vmatprep.mubr.f32.mxu0 0.0
        %1067 = vmatmul.mubr.f32.gmra.mrb[0].mxu0 %v438
        %v1068 = vpop.f32.mrb[0].mxu0
        %v1069 = vadd.f32 0.0, %v1068
        %v1070 = vpop.f32.mrb[0].mxu0
        %1071 = vmatprep.mubr.f32.mxu0 0.0
        %1072 = vmatmul.mubr.f32.gmra.mrb[0].mxu0 %v441
        %v1073 = vpop.f32.mrb[0].mxu0
        %v1074 = vadd.f32 0.0, %v1073
        %v1075 = vpop.f32.mrb[0].mxu0
        %1076 = vmatprep.mubr.f32.mxu0 0.0
        %1077 = vmatmul.mubr.f32.gmra.mrb[0].mxu0 %v444
        %v1078 = vpop.f32.mrb[0].mxu0
        %v1079 = vadd.f32 0.0, %v1078
        %v1080 = vpop.f32.mrb[0].mxu0
        %1081 = vmatprep.mubr.f32.mxu0 0.0
        %1082 = vmatmul.mubr.f32.gmra.mrb[0].mxu0 %v447
        %v1083 = vpop.f32.mrb[0].mxu0
        %v1084 = vadd.f32 0.0, %v1083
        %v1085 = vpop.f32.mrb[0].mxu0
        %1086 = vmatprep.mubr.f32.mxu0 0.0
        %1087 = vmatmul.mubr.f32.gmra.mrb[0].mxu0 %v450
        %v1088 = vpop.f32.mrb[0].mxu0
        %v1089 = vadd.f32 0.0, %v1088
        %v1090 = vpop.f32.mrb[0].mxu0
        %1091 = vmatprep.mubr.f32.mxu0 0.0
        %1092 = vmatmul.mubr.f32.gmra.mrb[0].mxu0 %v453
        %v1093 = vpop.f32.mrb[0].mxu0
        %v1094 = vadd.f32 0.0, %v1093
        %v1095 = vpop.f32.mrb[0].mxu0
        %1096 = vmatprep.mubr.f32.mxu0 0.0
        %1097 = vmatmul.mubr.f32.gmra.mrb[0].mxu0 %v456
        %v1098 = vpop.f32.mrb[0].mxu0
        %v1099 = vadd.f32 0.0, %v1098
        %v1100 = vpop.f32.mrb[0].mxu0
        %1101 = vmatprep.mubr.f32.mxu0 0.0
        %1102 = vmatmul.mubr.f32.gmra.mrb[0].mxu0 %v459
        %v1103 = vpop.f32.mrb[0].mxu0
        %v1104 = vadd.f32 0.0, %v1103
        %v1105 = vpop.f32.mrb[0].mxu0
        %1106 = vmatprep.mubr.f32.mxu0 0.0
        %1107 = vmatmul.mubr.f32.gmra.mrb[0].mxu0 %v462
        %v1108 = vpop.f32.mrb[0].mxu0
        %v1109 = vadd.f32 0.0, %v1108
        %v1110 = vpop.f32.mrb[0].mxu0
        %1111 = vmatprep.mubr.f32.mxu0 0.0
        %1112 = vmatmul.mubr.f32.gmra.mrb[0].mxu0 %v465
        %v1113 = vpop.f32.mrb[0].mxu0
        %v1114 = vadd.f32 0.0, %v1113
        %v1115 = vpop.f32.mrb[0].mxu0
        %1116 = vmatprep.mubr.f32.mxu0 0.0
        %1117 = vmatmul.mubr.f32.gmra.mrb[0].mxu0 %v468
        %v1118 = vpop.f32.mrb[0].mxu0
        %v1119 = vadd.f32 0.0, %v1118
        %v1120 = vpop.f32.mrb[0].mxu0
        %1121 = vmatprep.mubr.f32.mxu0 0.0
        %1122 = vmatmul.mubr.f32.gmra.mrb[0].mxu0 %v471
        %v1123 = vpop.f32.mrb[0].mxu0
        %v1124 = vadd.f32 0.0, %v1123
        %v1125 = vpop.f32.mrb[0].mxu0
        %1126 = vmatprep.mubr.f32.mxu0 0.0
        %1127 = vmatmul.mubr.f32.gmra.mrb[0].mxu0 %v474
        %v1128 = vpop.f32.mrb[0].mxu0
        %v1129 = vadd.f32 0.0, %v1128
        %v1130 = vpop.f32.mrb[0].mxu0
        %1131 = vmatprep.mubr.f32.mxu0 0.0
        %1132 = vmatmul.mubr.f32.gmra.mrb[0].mxu0 %v477
        %v1133 = vpop.f32.mrb[0].mxu0
        %v1134 = vadd.f32 0.0, %v1133
        %v1135 = vpop.f32.mrb[0].mxu0
        %1136 = vdwg.mxu0
        %v1138 = vsel %vm334, %v238, 0
        %v1141 = vsel %vm334, %v239, 0
        %v1144 = vsel %vm334, %v240, 0
        %v1147 = vsel %vm334, %v241, 0
        %v1150 = vsel %vm334, %v242, 0
        %v1153 = vsel %vm334, %v243, 0
        %v1156 = vsel %vm334, %v244, 0
        %v1159 = vsel %vm334, %v245, 0
        %v1162 = vsel %vm334, %v246, 0
        %v1165 = vsel %vm334, %v247, 0
        %v1168 = vsel %vm334, %v248, 0
        %v1171 = vsel %vm334, %v249, 0
        %v1174 = vsel %vm334, %v250, 0
        %v1177 = vsel %vm334, %v251, 0
        %v1180 = vsel %vm334, %v252, 0
        %v1183 = vsel %vm334, %v253, 0
        %v1186 = vsel %vm334, %v254, 0
        %v1189 = vsel %vm334, %v255, 0
        %v1192 = vsel %vm334, %v256, 0
        %v1195 = vsel %vm334, %v257, 0
        %v1198 = vsel %vm334, %v258, 0
        %v1201 = vsel %vm334, %v259, 0
        %v1204 = vsel %vm334, %v260, 0
        %v1207 = vsel %vm334, %v261, 0
        %v1210 = vsel %vm334, %v262, 0
        %v1213 = vsel %vm334, %v263, 0
        %v1216 = vsel %vm334, %v264, 0
        %v1219 = vsel %vm334, %v265, 0
        %v1222 = vsel %vm334, %v266, 0
        %v1225 = vsel %vm334, %v267, 0
        %v1228 = vsel %vm334, %v268, 0
        %v1231 = vsel %vm334, %v269, 0
        %v1234 = vsel %vm334, %v270, 0
        %v1237 = vsel %vm334, %v271, 0
        %v1240 = vsel %vm334, %v272, 0
        %v1243 = vsel %vm334, %v273, 0
        %v1246 = vsel %vm334, %v274, 0
        %v1249 = vsel %vm334, %v275, 0
        %v1252 = vsel %vm334, %v276, 0
        %v1255 = vsel %vm334, %v277, 0
        %v1258 = vsel %vm334, %v278, 0
        %v1261 = vsel %vm334, %v279, 0
        %v1264 = vsel %vm334, %v280, 0
        %v1267 = vsel %vm334, %v281, 0
        %v1270 = vsel %vm334, %v282, 0
        %v1273 = vsel %vm334, %v283, 0
        %v1276 = vsel %vm334, %v284, 0
        %v1279 = vsel %vm334, %v285, 0
        %1281 = vmatprep.subr.mxu0 %v311
        %1282 = vmatpush1.msra.mxu0 %v310
        %1283 = vmatprep.subr.mxu0 %v314
        %1284 = vmatpush1.msra.mxu0 %v313
        %1285 = vmatprep.subr.mxu0 %v317
        %1286 = vmatpush1.msra.mxu0 %v316
        %1287 = vmatprep.subr.mxu0 %v320
        %1288 = vmatpush1.msra.mxu0 %v319
        %1289 = vmatprep.subr.mxu0 %v323
        %1290 = vmatpush1.msra.mxu0 %v322
        %1291 = vmatprep.subr.mxu0 %v326
        %1292 = vmatpush1.msra.mxu0 %v325
        %1293 = vmatprep.subr.mxu0 %v329
        %1294 = vmatpush1.msra.mxu0 %v328
        %1295 = vmatprep.subr.mxu0 %v332
        %1296 = vmatpush1.msra.mxu0 %v331
        %1297 = vmatprep.subr.mxu0 0.0
        %1298 = vmatpush1.msra.mxu0 0.0
        %1299 = vmatprep.subr.mxu0 0.0
        %1300 = vmatpush1.msra.mxu0 0.0
        %1301 = vmatprep.subr.mxu0 0.0
        %1302 = vmatpush1.msra.mxu0 0.0
        %1303 = vmatprep.subr.mxu0 0.0
        %1304 = vmatpush1.msra.mxu0 0.0
        %1305 = vmatprep.subr.mxu0 0.0
        %1306 = vmatpush1.msra.mxu0 0.0
        %1307 = vmatprep.subr.mxu0 0.0
        %1308 = vmatpush1.msra.mxu0 0.0
        %1309 = vmatprep.subr.mxu0 0.0
        %1310 = vmatpush1.msra.mxu0 0.0
        %1311 = vmatprep.subr.mxu0 0.0
        %1312 = vmatpush1.msra.mxu0 0.0
        %1313 = vmatprep.subr.mxu0 0.0
        %1314 = vmatpush1.msra.mxu0 0.0
        %1315 = vmatprep.subr.mxu0 0.0
        %1316 = vmatpush1.msra.mxu0 0.0
        %1317 = vmatprep.subr.mxu0 0.0
        %1318 = vmatpush1.msra.mxu0 0.0
        %1319 = vmatprep.subr.mxu0 0.0
        %1320 = vmatpush1.msra.mxu0 0.0
        %1321 = vmatprep.subr.mxu0 0.0
        %1322 = vmatpush1.msra.mxu0 0.0
        %1323 = vmatprep.subr.mxu0 0.0
        %1324 = vmatpush1.msra.mxu0 0.0
        %1325 = vmatprep.subr.mxu0 0.0
        %1326 = vmatpush1.msra.mxu0 0.0
        %1327 = vmatprep.subr.mxu0 0.0
        %1328 = vmatpush1.msra.mxu0 0.0
        %1329 = vmatprep.subr.mxu0 0.0
        %1330 = vmatpush1.msra.mxu0 0.0
        %1331 = vmatprep.subr.mxu0 0.0
        %1332 = vmatpush1.msra.mxu0 0.0
        %1333 = vmatprep.subr.mxu0 0.0
        %1334 = vmatpush1.msra.mxu0 0.0
        %1335 = vmatprep.subr.mxu0 0.0
        %1336 = vmatpush1.msra.mxu0 0.0
        %1337 = vmatprep.subr.mxu0 0.0
        %1338 = vmatpush1.msra.mxu0 0.0
        %1339 = vmatprep.subr.mxu0 0.0
        %1340 = vmatpush1.msra.mxu0 0.0
        %1341 = vmatprep.subr.mxu0 0.0
        %1342 = vmatpush1.msra.mxu0 0.0
        %1343 = vmatprep.subr.mxu0 0.0
        %1344 = vmatpush1.msra.mxu0 0.0
        %1345 = vmatprep.mubr.f32.mxu0 0.0
        %1346 = vmatmul.mubr.f32.gmra.mrb[0].mxu0 %v1138
        %v1347 = vpop.f32.mrb[0].mxu0
        %v1348 = vadd.f32 0.0, %v1347
        %v1349 = vpop.f32.mrb[0].mxu0
        %v1350 = vadd.f32 0.0, %v1349
        %1351 = vmatprep.mubr.f32.mxu0 0.0
        %1352 = vmatmul.mubr.f32.gmra.mrb[0].mxu0 %v1141
        %v1353 = vpop.f32.mrb[0].mxu0
        %v1354 = vadd.f32 0.0, %v1353
        %v1355 = vpop.f32.mrb[0].mxu0
        %v1356 = vadd.f32 0.0, %v1355
        %1357 = vmatprep.mubr.f32.mxu0 0.0
        %1358 = vmatmul.mubr.f32.gmra.mrb[0].mxu0 %v1144
        %v1359 = vpop.f32.mrb[0].mxu0
        %v1360 = vadd.f32 0.0, %v1359
        %v1361 = vpop.f32.mrb[0].mxu0
        %v1362 = vadd.f32 0.0, %v1361
        %1363 = vmatprep.mubr.f32.mxu0 0.0
        %1364 = vmatmul.mubr.f32.gmra.mrb[0].mxu0 %v1147
        %v1365 = vpop.f32.mrb[0].mxu0
        %v1366 = vadd.f32 0.0, %v1365
        %v1367 = vpop.f32.mrb[0].mxu0
        %v1368 = vadd.f32 0.0, %v1367
        %1369 = vmatprep.mubr.f32.mxu0 0.0
        %1370 = vmatmul.mubr.f32.gmra.mrb[0].mxu0 %v1150
        %v1371 = vpop.f32.mrb[0].mxu0
        %v1372 = vadd.f32 0.0, %v1371
        %v1373 = vpop.f32.mrb[0].mxu0
        %v1374 = vadd.f32 0.0, %v1373
        %1375 = vmatprep.mubr.f32.mxu0 0.0
        %1376 = vmatmul.mubr.f32.gmra.mrb[0].mxu0 %v1153
        %v1377 = vpop.f32.mrb[0].mxu0
        %v1378 = vadd.f32 0.0, %v1377
        %v1379 = vpop.f32.mrb[0].mxu0
        %v1380 = vadd.f32 0.0, %v1379
        %1381 = vmatprep.mubr.f32.mxu0 0.0
        %1382 = vmatmul.mubr.f32.gmra.mrb[0].mxu0 %v1156
        %v1383 = vpop.f32.mrb[0].mxu0
        %v1384 = vadd.f32 0.0, %v1383
        %v1385 = vpop.f32.mrb[0].mxu0
        %v1386 = vadd.f32 0.0, %v1385
        %1387 = vmatprep.mubr.f32.mxu0 0.0
        %1388 = vmatmul.mubr.f32.gmra.mrb[0].mxu0 %v1159
        %v1389 = vpop.f32.mrb[0].mxu0
        %v1390 = vadd.f32 0.0, %v1389
        %v1391 = vpop.f32.mrb[0].mxu0
        %v1392 = vadd.f32 0.0, %v1391
        %1393 = vmatprep.mubr.f32.mxu0 0.0
        %1394 = vmatmul.mubr.f32.gmra.mrb[0].mxu0 %v1162
        %v1395 = vpop.f32.mrb[0].mxu0
        %v1396 = vadd.f32 0.0, %v1395
        %v1397 = vpop.f32.mrb[0].mxu0
        %v1398 = vadd.f32 0.0, %v1397
        %1399 = vmatprep.mubr.f32.mxu0 0.0
        %1400 = vmatmul.mubr.f32.gmra.mrb[0].mxu0 %v1165
        %v1401 = vpop.f32.mrb[0].mxu0
        %v1402 = vadd.f32 0.0, %v1401
        %v1403 = vpop.f32.mrb[0].mxu0
        %v1404 = vadd.f32 0.0, %v1403
        %1405 = vmatprep.mubr.f32.mxu0 0.0
        %1406 = vmatmul.mubr.f32.gmra.mrb[0].mxu0 %v1168
        %v1407 = vpop.f32.mrb[0].mxu0
        %v1408 = vadd.f32 0.0, %v1407
        %v1409 = vpop.f32.mrb[0].mxu0
        %v1410 = vadd.f32 0.0, %v1409
        %1411 = vmatprep.mubr.f32.mxu0 0.0
        %1412 = vmatmul.mubr.f32.gmra.mrb[0].mxu0 %v1171
        %v1413 = vpop.f32.mrb[0].mxu0
        %v1414 = vadd.f32 0.0, %v1413
        %v1415 = vpop.f32.mrb[0].mxu0
        %v1416 = vadd.f32 0.0, %v1415
        %1417 = vmatprep.mubr.f32.mxu0 0.0
        %1418 = vmatmul.mubr.f32.gmra.mrb[0].mxu0 %v1174
        %v1419 = vpop.f32.mrb[0].mxu0
        %v1420 = vadd.f32 0.0, %v1419
        %v1421 = vpop.f32.mrb[0].mxu0
        %v1422 = vadd.f32 0.0, %v1421
        %1423 = vmatprep.mubr.f32.mxu0 0.0
        %1424 = vmatmul.mubr.f32.gmra.mrb[0].mxu0 %v1177
        %v1425 = vpop.f32.mrb[0].mxu0
        %v1426 = vadd.f32 0.0, %v1425
        %v1427 = vpop.f32.mrb[0].mxu0
        %v1428 = vadd.f32 0.0, %v1427
        %1429 = vmatprep.mubr.f32.mxu0 0.0
        %1430 = vmatmul.mubr.f32.gmra.mrb[0].mxu0 %v1180
        %v1431 = vpop.f32.mrb[0].mxu0
        %v1432 = vadd.f32 0.0, %v1431
        %v1433 = vpop.f32.mrb[0].mxu0
        %v1434 = vadd.f32 0.0, %v1433
        %1435 = vmatprep.mubr.f32.mxu0 0.0
        %1436 = vmatmul.mubr.f32.gmra.mrb[0].mxu0 %v1183
        %v1437 = vpop.f32.mrb[0].mxu0
        %v1438 = vadd.f32 0.0, %v1437
        %v1439 = vpop.f32.mrb[0].mxu0
        %v1440 = vadd.f32 0.0, %v1439
        %1441 = vmatprep.mubr.f32.mxu0 0.0
        %1442 = vmatmul.mubr.f32.gmra.mrb[0].mxu0 %v1186
        %v1443 = vpop.f32.mrb[0].mxu0
        %v1444 = vadd.f32 0.0, %v1443
        %v1445 = vpop.f32.mrb[0].mxu0
        %v1446 = vadd.f32 0.0, %v1445
        %1447 = vmatprep.mubr.f32.mxu0 0.0
        %1448 = vmatmul.mubr.f32.gmra.mrb[0].mxu0 %v1189
        %v1449 = vpop.f32.mrb[0].mxu0
        %v1450 = vadd.f32 0.0, %v1449
        %v1451 = vpop.f32.mrb[0].mxu0
        %v1452 = vadd.f32 0.0, %v1451
        %1453 = vmatprep.mubr.f32.mxu0 0.0
        %1454 = vmatmul.mubr.f32.gmra.mrb[0].mxu0 %v1192
        %v1455 = vpop.f32.mrb[0].mxu0
        %v1456 = vadd.f32 0.0, %v1455
        %v1457 = vpop.f32.mrb[0].mxu0
        %v1458 = vadd.f32 0.0, %v1457
        %1459 = vmatprep.mubr.f32.mxu0 0.0
        %1460 = vmatmul.mubr.f32.gmra.mrb[0].mxu0 %v1195
        %v1461 = vpop.f32.mrb[0].mxu0
        %v1462 = vadd.f32 0.0, %v1461
        %v1463 = vpop.f32.mrb[0].mxu0
        %v1464 = vadd.f32 0.0, %v1463
        %1465 = vmatprep.mubr.f32.mxu0 0.0
        %1466 = vmatmul.mubr.f32.gmra.mrb[0].mxu0 %v1198
        %v1467 = vpop.f32.mrb[0].mxu0
        %v1468 = vadd.f32 0.0, %v1467
        %v1469 = vpop.f32.mrb[0].mxu0
        %v1470 = vadd.f32 0.0, %v1469
        %1471 = vmatprep.mubr.f32.mxu0 0.0
        %1472 = vmatmul.mubr.f32.gmra.mrb[0].mxu0 %v1201
        %v1473 = vpop.f32.mrb[0].mxu0
        %v1474 = vadd.f32 0.0, %v1473
        %v1475 = vpop.f32.mrb[0].mxu0
        %v1476 = vadd.f32 0.0, %v1475
        %1477 = vmatprep.mubr.f32.mxu0 0.0
        %1478 = vmatmul.mubr.f32.gmra.mrb[0].mxu0 %v1204
        %v1479 = vpop.f32.mrb[0].mxu0
        %v1480 = vadd.f32 0.0, %v1479
        %v1481 = vpop.f32.mrb[0].mxu0
        %v1482 = vadd.f32 0.0, %v1481
        %1483 = vmatprep.mubr.f32.mxu0 0.0
        %1484 = vmatmul.mubr.f32.gmra.mrb[0].mxu0 %v1207
        %v1485 = vpop.f32.mrb[0].mxu0
        %v1486 = vadd.f32 0.0, %v1485
        %v1487 = vpop.f32.mrb[0].mxu0
        %v1488 = vadd.f32 0.0, %v1487
        %1489 = vmatprep.mubr.f32.mxu0 0.0
        %1490 = vmatmul.mubr.f32.gmra.mrb[0].mxu0 %v1210
        %v1491 = vpop.f32.mrb[0].mxu0
        %v1492 = vadd.f32 0.0, %v1491
        %v1493 = vpop.f32.mrb[0].mxu0
        %v1494 = vadd.f32 0.0, %v1493
        %1495 = vmatprep.mubr.f32.mxu0 0.0
        %1496 = vmatmul.mubr.f32.gmra.mrb[0].mxu0 %v1213
        %v1497 = vpop.f32.mrb[0].mxu0
        %v1498 = vadd.f32 0.0, %v1497
        %v1499 = vpop.f32.mrb[0].mxu0
        %v1500 = vadd.f32 0.0, %v1499
        %1501 = vmatprep.mubr.f32.mxu0 0.0
        %1502 = vmatmul.mubr.f32.gmra.mrb[0].mxu0 %v1216
        %v1503 = vpop.f32.mrb[0].mxu0
        %v1504 = vadd.f32 0.0, %v1503
        %v1505 = vpop.f32.mrb[0].mxu0
        %v1506 = vadd.f32 0.0, %v1505
        %1507 = vmatprep.mubr.f32.mxu0 0.0
        %1508 = vmatmul.mubr.f32.gmra.mrb[0].mxu0 %v1219
        %v1509 = vpop.f32.mrb[0].mxu0
        %v1510 = vadd.f32 0.0, %v1509
        %v1511 = vpop.f32.mrb[0].mxu0
        %v1512 = vadd.f32 0.0, %v1511
        %1513 = vmatprep.mubr.f32.mxu0 0.0
        %1514 = vmatmul.mubr.f32.gmra.mrb[0].mxu0 %v1222
        %v1515 = vpop.f32.mrb[0].mxu0
        %v1516 = vadd.f32 0.0, %v1515
        %v1517 = vpop.f32.mrb[0].mxu0
        %v1518 = vadd.f32 0.0, %v1517
        %1519 = vmatprep.mubr.f32.mxu0 0.0
        %1520 = vmatmul.mubr.f32.gmra.mrb[0].mxu0 %v1225
        %v1521 = vpop.f32.mrb[0].mxu0
        %v1522 = vadd.f32 0.0, %v1521
        %v1523 = vpop.f32.mrb[0].mxu0
        %v1524 = vadd.f32 0.0, %v1523
        %1525 = vmatprep.mubr.f32.mxu0 0.0
        %1526 = vmatmul.mubr.f32.gmra.mrb[0].mxu0 %v1228
        %v1527 = vpop.f32.mrb[0].mxu0
        %v1528 = vadd.f32 0.0, %v1527
        %v1529 = vpop.f32.mrb[0].mxu0
        %v1530 = vadd.f32 0.0, %v1529
        %1531 = vmatprep.mubr.f32.mxu0 0.0
        %1532 = vmatmul.mubr.f32.gmra.mrb[0].mxu0 %v1231
        %v1533 = vpop.f32.mrb[0].mxu0
        %v1534 = vadd.f32 0.0, %v1533
        %v1535 = vpop.f32.mrb[0].mxu0
        %v1536 = vadd.f32 0.0, %v1535
        %1537 = vmatprep.mubr.f32.mxu0 0.0
        %1538 = vmatmul.mubr.f32.gmra.mrb[0].mxu0 %v1234
        %v1539 = vpop.f32.mrb[0].mxu0
        %v1540 = vadd.f32 0.0, %v1539
        %v1541 = vpop.f32.mrb[0].mxu0
        %v1542 = vadd.f32 0.0, %v1541
        %1543 = vmatprep.mubr.f32.mxu0 0.0
        %1544 = vmatmul.mubr.f32.gmra.mrb[0].mxu0 %v1237
        %v1545 = vpop.f32.mrb[0].mxu0
        %v1546 = vadd.f32 0.0, %v1545
        %v1547 = vpop.f32.mrb[0].mxu0
        %v1548 = vadd.f32 0.0, %v1547
        %1549 = vmatprep.mubr.f32.mxu0 0.0
        %1550 = vmatmul.mubr.f32.gmra.mrb[0].mxu0 %v1240
        %v1551 = vpop.f32.mrb[0].mxu0
        %v1552 = vadd.f32 0.0, %v1551
        %v1553 = vpop.f32.mrb[0].mxu0
        %v1554 = vadd.f32 0.0, %v1553
        %1555 = vmatprep.mubr.f32.mxu0 0.0
        %1556 = vmatmul.mubr.f32.gmra.mrb[0].mxu0 %v1243
        %v1557 = vpop.f32.mrb[0].mxu0
        %v1558 = vadd.f32 0.0, %v1557
        %v1559 = vpop.f32.mrb[0].mxu0
        %v1560 = vadd.f32 0.0, %v1559
        %1561 = vmatprep.mubr.f32.mxu0 0.0
        %1562 = vmatmul.mubr.f32.gmra.mrb[0].mxu0 %v1246
        %v1563 = vpop.f32.mrb[0].mxu0
        %v1564 = vadd.f32 0.0, %v1563
        %v1565 = vpop.f32.mrb[0].mxu0
        %v1566 = vadd.f32 0.0, %v1565
        %1567 = vmatprep.mubr.f32.mxu0 0.0
        %1568 = vmatmul.mubr.f32.gmra.mrb[0].mxu0 %v1249
        %v1569 = vpop.f32.mrb[0].mxu0
        %v1570 = vadd.f32 0.0, %v1569
        %v1571 = vpop.f32.mrb[0].mxu0
        %v1572 = vadd.f32 0.0, %v1571
        %1573 = vmatprep.mubr.f32.mxu0 0.0
        %1574 = vmatmul.mubr.f32.gmra.mrb[0].mxu0 %v1252
        %v1575 = vpop.f32.mrb[0].mxu0
        %v1576 = vadd.f32 0.0, %v1575
        %v1577 = vpop.f32.mrb[0].mxu0
        %v1578 = vadd.f32 0.0, %v1577
        %1579 = vmatprep.mubr.f32.mxu0 0.0
        %1580 = vmatmul.mubr.f32.gmra.mrb[0].mxu0 %v1255
        %v1581 = vpop.f32.mrb[0].mxu0
        %v1582 = vadd.f32 0.0, %v1581
        %v1583 = vpop.f32.mrb[0].mxu0
        %v1584 = vadd.f32 0.0, %v1583
        %1585 = vmatprep.mubr.f32.mxu0 0.0
        %1586 = vmatmul.mubr.f32.gmra.mrb[0].mxu0 %v1258
        %v1587 = vpop.f32.mrb[0].mxu0
        %v1588 = vadd.f32 0.0, %v1587
        %v1589 = vpop.f32.mrb[0].mxu0
        %v1590 = vadd.f32 0.0, %v1589
        %1591 = vmatprep.mubr.f32.mxu0 0.0
        %1592 = vmatmul.mubr.f32.gmra.mrb[0].mxu0 %v1261
        %v1593 = vpop.f32.mrb[0].mxu0
        %v1594 = vadd.f32 0.0, %v1593
        %v1595 = vpop.f32.mrb[0].mxu0
        %v1596 = vadd.f32 0.0, %v1595
        %1597 = vmatprep.mubr.f32.mxu0 0.0
        %1598 = vmatmul.mubr.f32.gmra.mrb[0].mxu0 %v1264
        %v1599 = vpop.f32.mrb[0].mxu0
        %v1600 = vadd.f32 0.0, %v1599
        %v1601 = vpop.f32.mrb[0].mxu0
        %v1602 = vadd.f32 0.0, %v1601
        %1603 = vmatprep.mubr.f32.mxu0 0.0
        %1604 = vmatmul.mubr.f32.gmra.mrb[0].mxu0 %v1267
        %v1605 = vpop.f32.mrb[0].mxu0
        %v1606 = vadd.f32 0.0, %v1605
        %v1607 = vpop.f32.mrb[0].mxu0
        %v1608 = vadd.f32 0.0, %v1607
        %1609 = vmatprep.mubr.f32.mxu0 0.0
        %1610 = vmatmul.mubr.f32.gmra.mrb[0].mxu0 %v1270
        %v1611 = vpop.f32.mrb[0].mxu0
        %v1612 = vadd.f32 0.0, %v1611
        %v1613 = vpop.f32.mrb[0].mxu0
        %v1614 = vadd.f32 0.0, %v1613
        %1615 = vmatprep.mubr.f32.mxu0 0.0
        %1616 = vmatmul.mubr.f32.gmra.mrb[0].mxu0 %v1273
        %v1617 = vpop.f32.mrb[0].mxu0
        %v1618 = vadd.f32 0.0, %v1617
        %v1619 = vpop.f32.mrb[0].mxu0
        %v1620 = vadd.f32 0.0, %v1619
        %1621 = vmatprep.mubr.f32.mxu0 0.0
        %1622 = vmatmul.mubr.f32.gmra.mrb[0].mxu0 %v1276
        %v1623 = vpop.f32.mrb[0].mxu0
        %v1624 = vadd.f32 0.0, %v1623
        %v1625 = vpop.f32.mrb[0].mxu0
        %v1626 = vadd.f32 0.0, %v1625
        %1627 = vmatprep.mubr.f32.mxu0 0.0
        %1628 = vmatmul.mubr.f32.gmra.mrb[0].mxu0 %v1279
        %v1629 = vpop.f32.mrb[0].mxu0
        %v1630 = vadd.f32 0.0, %v1629
        %v1631 = vpop.f32.mrb[0].mxu0
        %v1632 = vadd.f32 0.0, %v1631
        %1633 = vdwg.mxu0
        %1634 = vmatprep.subr.mxu0 0.0
        %1635 = vmatpush1.msra.mxu0 %v312
        %1636 = vmatprep.subr.mxu0 0.0
        %1637 = vmatpush1.msra.mxu0 %v315
        %1638 = vmatprep.subr.mxu0 0.0
        %1639 = vmatpush1.msra.mxu0 %v318
        %1640 = vmatprep.subr.mxu0 0.0
        %1641 = vmatpush1.msra.mxu0 %v321
        %1642 = vmatprep.subr.mxu0 0.0
        %1643 = vmatpush1.msra.mxu0 %v324
        %1644 = vmatprep.subr.mxu0 0.0
        %1645 = vmatpush1.msra.mxu0 %v327
        %1646 = vmatprep.subr.mxu0 0.0
        %1647 = vmatpush1.msra.mxu0 %v330
        %1648 = vmatprep.subr.mxu0 0.0
        %1649 = vmatpush1.msra.mxu0 %v333
        %1650 = vmatprep.subr.mxu0 0.0
        %1651 = vmatpush1.msra.mxu0 0.0
        %1652 = vmatprep.subr.mxu0 0.0
        %1653 = vmatpush1.msra.mxu0 0.0
        %1654 = vmatprep.subr.mxu0 0.0
        %1655 = vmatpush1.msra.mxu0 0.0
        %1656 = vmatprep.subr.mxu0 0.0
        %1657 = vmatpush1.msra.mxu0 0.0
        %1658 = vmatprep.subr.mxu0 0.0
        %1659 = vmatpush1.msra.mxu0 0.0
        %1660 = vmatprep.subr.mxu0 0.0
        %1661 = vmatpush1.msra.mxu0 0.0
        %1662 = vmatprep.subr.mxu0 0.0
        %1663 = vmatpush1.msra.mxu0 0.0
        %1664 = vmatprep.subr.mxu0 0.0
        %1665 = vmatpush1.msra.mxu0 0.0
        %1666 = vmatprep.subr.mxu0 0.0
        %1667 = vmatpush1.msra.mxu0 0.0
        %1668 = vmatprep.subr.mxu0 0.0
        %1669 = vmatpush1.msra.mxu0 0.0
        %1670 = vmatprep.subr.mxu0 0.0
        %1671 = vmatpush1.msra.mxu0 0.0
        %1672 = vmatprep.subr.mxu0 0.0
        %1673 = vmatpush1.msra.mxu0 0.0
        %1674 = vmatprep.subr.mxu0 0.0
        %1675 = vmatpush1.msra.mxu0 0.0
        %1676 = vmatprep.subr.mxu0 0.0
        %1677 = vmatpush1.msra.mxu0 0.0
        %1678 = vmatprep.subr.mxu0 0.0
        %1679 = vmatpush1.msra.mxu0 0.0
        %1680 = vmatprep.subr.mxu0 0.0
        %1681 = vmatpush1.msra.mxu0 0.0
        %1682 = vmatprep.subr.mxu0 0.0
        %1683 = vmatpush1.msra.mxu0 0.0
        %1684 = vmatprep.subr.mxu0 0.0
        %1685 = vmatpush1.msra.mxu0 0.0
        %1686 = vmatprep.subr.mxu0 0.0
        %1687 = vmatpush1.msra.mxu0 0.0
        %1688 = vmatprep.subr.mxu0 0.0
        %1689 = vmatpush1.msra.mxu0 0.0
        %1690 = vmatprep.subr.mxu0 0.0
        %1691 = vmatpush1.msra.mxu0 0.0
        %1692 = vmatprep.subr.mxu0 0.0
        %1693 = vmatpush1.msra.mxu0 0.0
        %1694 = vmatprep.subr.mxu0 0.0
        %1695 = vmatpush1.msra.mxu0 0.0
        %1696 = vmatprep.subr.mxu0 0.0
        %1697 = vmatpush1.msra.mxu0 0.0
        %1698 = vmatprep.mubr.f32.mxu0 0.0
        %1699 = vmatmul.mubr.f32.gmra.mrb[0].mxu0 %v1138
        %v1700 = vpop.f32.mrb[0].mxu0
        %v1701 = vadd.f32 0.0, %v1700
        %v1702 = vpop.f32.mrb[0].mxu0
        %1703 = vmatprep.mubr.f32.mxu0 0.0
        %1704 = vmatmul.mubr.f32.gmra.mrb[0].mxu0 %v1141
        %v1705 = vpop.f32.mrb[0].mxu0
        %v1706 = vadd.f32 0.0, %v1705
        %v1707 = vpop.f32.mrb[0].mxu0
        %1708 = vmatprep.mubr.f32.mxu0 0.0
        %1709 = vmatmul.mubr.f32.gmra.mrb[0].mxu0 %v1144
        %v1710 = vpop.f32.mrb[0].mxu0
        %v1711 = vadd.f32 0.0, %v1710
        %v1712 = vpop.f32.mrb[0].mxu0
        %1713 = vmatprep.mubr.f32.mxu0 0.0
        %1714 = vmatmul.mubr.f32.gmra.mrb[0].mxu0 %v1147
        %v1715 = vpop.f32.mrb[0].mxu0
        %v1716 = vadd.f32 0.0, %v1715
        %v1717 = vpop.f32.mrb[0].mxu0
        %1718 = vmatprep.mubr.f32.mxu0 0.0
        %1719 = vmatmul.mubr.f32.gmra.mrb[0].mxu0 %v1150
        %v1720 = vpop.f32.mrb[0].mxu0
        %v1721 = vadd.f32 0.0, %v1720
        %v1722 = vpop.f32.mrb[0].mxu0
        %1723 = vmatprep.mubr.f32.mxu0 0.0
        %1724 = vmatmul.mubr.f32.gmra.mrb[0].mxu0 %v1153
        %v1725 = vpop.f32.mrb[0].mxu0
        %v1726 = vadd.f32 0.0, %v1725
        %v1727 = vpop.f32.mrb[0].mxu0
        %1728 = vmatprep.mubr.f32.mxu0 0.0
        %1729 = vmatmul.mubr.f32.gmra.mrb[0].mxu0 %v1156
        %v1730 = vpop.f32.mrb[0].mxu0
        %v1731 = vadd.f32 0.0, %v1730
        %v1732 = vpop.f32.mrb[0].mxu0
        %1733 = vmatprep.mubr.f32.mxu0 0.0
        %1734 = vmatmul.mubr.f32.gmra.mrb[0].mxu0 %v1159
        %v1735 = vpop.f32.mrb[0].mxu0
        %v1736 = vadd.f32 0.0, %v1735
        %v1737 = vpop.f32.mrb[0].mxu0
        %1738 = vmatprep.mubr.f32.mxu0 0.0
        %1739 = vmatmul.mubr.f32.gmra.mrb[0].mxu0 %v1162
        %v1740 = vpop.f32.mrb[0].mxu0
        %v1741 = vadd.f32 0.0, %v1740
        %v1742 = vpop.f32.mrb[0].mxu0
        %1743 = vmatprep.mubr.f32.mxu0 0.0
        %1744 = vmatmul.mubr.f32.gmra.mrb[0].mxu0 %v1165
        %v1745 = vpop.f32.mrb[0].mxu0
        %v1746 = vadd.f32 0.0, %v1745
        %v1747 = vpop.f32.mrb[0].mxu0
        %1748 = vmatprep.mubr.f32.mxu0 0.0
        %1749 = vmatmul.mubr.f32.gmra.mrb[0].mxu0 %v1168
        %v1750 = vpop.f32.mrb[0].mxu0
        %v1751 = vadd.f32 0.0, %v1750
        %v1752 = vpop.f32.mrb[0].mxu0
        %1753 = vmatprep.mubr.f32.mxu0 0.0
        %1754 = vmatmul.mubr.f32.gmra.mrb[0].mxu0 %v1171
        %v1755 = vpop.f32.mrb[0].mxu0
        %v1756 = vadd.f32 0.0, %v1755
        %v1757 = vpop.f32.mrb[0].mxu0
        %1758 = vmatprep.mubr.f32.mxu0 0.0
        %1759 = vmatmul.mubr.f32.gmra.mrb[0].mxu0 %v1174
        %v1760 = vpop.f32.mrb[0].mxu0
        %v1761 = vadd.f32 0.0, %v1760
        %v1762 = vpop.f32.mrb[0].mxu0
        %1763 = vmatprep.mubr.f32.mxu0 0.0
        %1764 = vmatmul.mubr.f32.gmra.mrb[0].mxu0 %v1177
        %v1765 = vpop.f32.mrb[0].mxu0
        %v1766 = vadd.f32 0.0, %v1765
        %v1767 = vpop.f32.mrb[0].mxu0
        %1768 = vmatprep.mubr.f32.mxu0 0.0
        %1769 = vmatmul.mubr.f32.gmra.mrb[0].mxu0 %v1180
        %v1770 = vpop.f32.mrb[0].mxu0
        %v1771 = vadd.f32 0.0, %v1770
        %v1772 = vpop.f32.mrb[0].mxu0
        %1773 = vmatprep.mubr.f32.mxu0 0.0
        %1774 = vmatmul.mubr.f32.gmra.mrb[0].mxu0 %v1183
        %v1775 = vpop.f32.mrb[0].mxu0
        %v1776 = vadd.f32 0.0, %v1775
        %v1777 = vpop.f32.mrb[0].mxu0
        %1778 = vmatprep.mubr.f32.mxu0 0.0
        %1779 = vmatmul.mubr.f32.gmra.mrb[0].mxu0 %v1186
        %v1780 = vpop.f32.mrb[0].mxu0
        %v1781 = vadd.f32 0.0, %v1780
        %v1782 = vpop.f32.mrb[0].mxu0
        %1783 = vmatprep.mubr.f32.mxu0 0.0
        %1784 = vmatmul.mubr.f32.gmra.mrb[0].mxu0 %v1189
        %v1785 = vpop.f32.mrb[0].mxu0
        %v1786 = vadd.f32 0.0, %v1785
        %v1787 = vpop.f32.mrb[0].mxu0
        %1788 = vmatprep.mubr.f32.mxu0 0.0
        %1789 = vmatmul.mubr.f32.gmra.mrb[0].mxu0 %v1192
        %v1790 = vpop.f32.mrb[0].mxu0
        %v1791 = vadd.f32 0.0, %v1790
        %v1792 = vpop.f32.mrb[0].mxu0
        %1793 = vmatprep.mubr.f32.mxu0 0.0
        %1794 = vmatmul.mubr.f32.gmra.mrb[0].mxu0 %v1195
        %v1795 = vpop.f32.mrb[0].mxu0
        %v1796 = vadd.f32 0.0, %v1795
        %v1797 = vpop.f32.mrb[0].mxu0
        %1798 = vmatprep.mubr.f32.mxu0 0.0
        %1799 = vmatmul.mubr.f32.gmra.mrb[0].mxu0 %v1198
        %v1800 = vpop.f32.mrb[0].mxu0
        %v1801 = vadd.f32 0.0, %v1800
        %v1802 = vpop.f32.mrb[0].mxu0
        %1803 = vmatprep.mubr.f32.mxu0 0.0
        %1804 = vmatmul.mubr.f32.gmra.mrb[0].mxu0 %v1201
        %v1805 = vpop.f32.mrb[0].mxu0
        %v1806 = vadd.f32 0.0, %v1805
        %v1807 = vpop.f32.mrb[0].mxu0
        %1808 = vmatprep.mubr.f32.mxu0 0.0
        %1809 = vmatmul.mubr.f32.gmra.mrb[0].mxu0 %v1204
        %v1810 = vpop.f32.mrb[0].mxu0
        %v1811 = vadd.f32 0.0, %v1810
        %v1812 = vpop.f32.mrb[0].mxu0
        %1813 = vmatprep.mubr.f32.mxu0 0.0
        %1814 = vmatmul.mubr.f32.gmra.mrb[0].mxu0 %v1207
        %v1815 = vpop.f32.mrb[0].mxu0
        %v1816 = vadd.f32 0.0, %v1815
        %v1817 = vpop.f32.mrb[0].mxu0
        %1818 = vmatprep.mubr.f32.mxu0 0.0
        %1819 = vmatmul.mubr.f32.gmra.mrb[0].mxu0 %v1210
        %v1820 = vpop.f32.mrb[0].mxu0
        %v1821 = vadd.f32 0.0, %v1820
        %v1822 = vpop.f32.mrb[0].mxu0
        %1823 = vmatprep.mubr.f32.mxu0 0.0
        %1824 = vmatmul.mubr.f32.gmra.mrb[0].mxu0 %v1213
        %v1825 = vpop.f32.mrb[0].mxu0
        %v1826 = vadd.f32 0.0, %v1825
        %v1827 = vpop.f32.mrb[0].mxu0
        %1828 = vmatprep.mubr.f32.mxu0 0.0
        %1829 = vmatmul.mubr.f32.gmra.mrb[0].mxu0 %v1216
        %v1830 = vpop.f32.mrb[0].mxu0
        %v1831 = vadd.f32 0.0, %v1830
        %v1832 = vpop.f32.mrb[0].mxu0
        %1833 = vmatprep.mubr.f32.mxu0 0.0
        %1834 = vmatmul.mubr.f32.gmra.mrb[0].mxu0 %v1219
        %v1835 = vpop.f32.mrb[0].mxu0
        %v1836 = vadd.f32 0.0, %v1835
        %v1837 = vpop.f32.mrb[0].mxu0
        %1838 = vmatprep.mubr.f32.mxu0 0.0
        %1839 = vmatmul.mubr.f32.gmra.mrb[0].mxu0 %v1222
        %v1840 = vpop.f32.mrb[0].mxu0
        %v1841 = vadd.f32 0.0, %v1840
        %v1842 = vpop.f32.mrb[0].mxu0
        %1843 = vmatprep.mubr.f32.mxu0 0.0
        %1844 = vmatmul.mubr.f32.gmra.mrb[0].mxu0 %v1225
        %v1845 = vpop.f32.mrb[0].mxu0
        %v1846 = vadd.f32 0.0, %v1845
        %v1847 = vpop.f32.mrb[0].mxu0
        %1848 = vmatprep.mubr.f32.mxu0 0.0
        %1849 = vmatmul.mubr.f32.gmra.mrb[0].mxu0 %v1228
        %v1850 = vpop.f32.mrb[0].mxu0
        %v1851 = vadd.f32 0.0, %v1850
        %v1852 = vpop.f32.mrb[0].mxu0
        %1853 = vmatprep.mubr.f32.mxu0 0.0
        %1854 = vmatmul.mubr.f32.gmra.mrb[0].mxu0 %v1231
        %v1855 = vpop.f32.mrb[0].mxu0
        %v1856 = vadd.f32 0.0, %v1855
        %v1857 = vpop.f32.mrb[0].mxu0
        %1858 = vmatprep.mubr.f32.mxu0 0.0
        %1859 = vmatmul.mubr.f32.gmra.mrb[0].mxu0 %v1234
        %v1860 = vpop.f32.mrb[0].mxu0
        %v1861 = vadd.f32 0.0, %v1860
        %v1862 = vpop.f32.mrb[0].mxu0
        %1863 = vmatprep.mubr.f32.mxu0 0.0
        %1864 = vmatmul.mubr.f32.gmra.mrb[0].mxu0 %v1237
        %v1865 = vpop.f32.mrb[0].mxu0
        %v1866 = vadd.f32 0.0, %v1865
        %v1867 = vpop.f32.mrb[0].mxu0
        %1868 = vmatprep.mubr.f32.mxu0 0.0
        %1869 = vmatmul.mubr.f32.gmra.mrb[0].mxu0 %v1240
        %v1870 = vpop.f32.mrb[0].mxu0
        %v1871 = vadd.f32 0.0, %v1870
        %v1872 = vpop.f32.mrb[0].mxu0
        %1873 = vmatprep.mubr.f32.mxu0 0.0
        %1874 = vmatmul.mubr.f32.gmra.mrb[0].mxu0 %v1243
        %v1875 = vpop.f32.mrb[0].mxu0
        %v1876 = vadd.f32 0.0, %v1875
        %v1877 = vpop.f32.mrb[0].mxu0
        %1878 = vmatprep.mubr.f32.mxu0 0.0
        %1879 = vmatmul.mubr.f32.gmra.mrb[0].mxu0 %v1246
        %v1880 = vpop.f32.mrb[0].mxu0
        %v1881 = vadd.f32 0.0, %v1880
        %v1882 = vpop.f32.mrb[0].mxu0
        %1883 = vmatprep.mubr.f32.mxu0 0.0
        %1884 = vmatmul.mubr.f32.gmra.mrb[0].mxu0 %v1249
        %v1885 = vpop.f32.mrb[0].mxu0
        %v1886 = vadd.f32 0.0, %v1885
        %v1887 = vpop.f32.mrb[0].mxu0
        %1888 = vmatprep.mubr.f32.mxu0 0.0
        %1889 = vmatmul.mubr.f32.gmra.mrb[0].mxu0 %v1252
        %v1890 = vpop.f32.mrb[0].mxu0
        %v1891 = vadd.f32 0.0, %v1890
        %v1892 = vpop.f32.mrb[0].mxu0
        %1893 = vmatprep.mubr.f32.mxu0 0.0
        %1894 = vmatmul.mubr.f32.gmra.mrb[0].mxu0 %v1255
        %v1895 = vpop.f32.mrb[0].mxu0
        %v1896 = vadd.f32 0.0, %v1895
        %v1897 = vpop.f32.mrb[0].mxu0
        %1898 = vmatprep.mubr.f32.mxu0 0.0
        %1899 = vmatmul.mubr.f32.gmra.mrb[0].mxu0 %v1258
        %v1900 = vpop.f32.mrb[0].mxu0
        %v1901 = vadd.f32 0.0, %v1900
        %v1902 = vpop.f32.mrb[0].mxu0
        %1903 = vmatprep.mubr.f32.mxu0 0.0
        %1904 = vmatmul.mubr.f32.gmra.mrb[0].mxu0 %v1261
        %v1905 = vpop.f32.mrb[0].mxu0
        %v1906 = vadd.f32 0.0, %v1905
        %v1907 = vpop.f32.mrb[0].mxu0
        %1908 = vmatprep.mubr.f32.mxu0 0.0
        %1909 = vmatmul.mubr.f32.gmra.mrb[0].mxu0 %v1264
        %v1910 = vpop.f32.mrb[0].mxu0
        %v1911 = vadd.f32 0.0, %v1910
        %v1912 = vpop.f32.mrb[0].mxu0
        %1913 = vmatprep.mubr.f32.mxu0 0.0
        %1914 = vmatmul.mubr.f32.gmra.mrb[0].mxu0 %v1267
        %v1915 = vpop.f32.mrb[0].mxu0
        %v1916 = vadd.f32 0.0, %v1915
        %v1917 = vpop.f32.mrb[0].mxu0
        %1918 = vmatprep.mubr.f32.mxu0 0.0
        %1919 = vmatmul.mubr.f32.gmra.mrb[0].mxu0 %v1270
        %v1920 = vpop.f32.mrb[0].mxu0
        %v1921 = vadd.f32 0.0, %v1920
        %v1922 = vpop.f32.mrb[0].mxu0
        %1923 = vmatprep.mubr.f32.mxu0 0.0
        %1924 = vmatmul.mubr.f32.gmra.mrb[0].mxu0 %v1273
        %v1925 = vpop.f32.mrb[0].mxu0
        %v1926 = vadd.f32 0.0, %v1925
        %v1927 = vpop.f32.mrb[0].mxu0
        %1928 = vmatprep.mubr.f32.mxu0 0.0
        %1929 = vmatmul.mubr.f32.gmra.mrb[0].mxu0 %v1276
        %v1930 = vpop.f32.mrb[0].mxu0
        %v1931 = vadd.f32 0.0, %v1930
        %v1932 = vpop.f32.mrb[0].mxu0
        %1933 = vmatprep.mubr.f32.mxu0 0.0
        %1934 = vmatmul.mubr.f32.gmra.mrb[0].mxu0 %v1279
        %v1935 = vpop.f32.mrb[0].mxu0
        %v1936 = vadd.f32 0.0, %v1935
        %v1937 = vpop.f32.mrb[0].mxu0
        %1938 = vdwg.mxu0
        %1939 = vst [vmem:[%s180] sm:$0xff] %v546
        %1940 = vst [vmem:[%s180 + $0x8] sm:$0xff] %v548
        %1941 = vst [vmem:[%s180 + $0x10] sm:$0xff] %v899
        %1942 = vst [vmem:[%s180 + $0x18] sm:$0xff] %v552
        %1943 = vst [vmem:[%s180 + $0x20] sm:$0xff] %v554
        %1944 = vst [vmem:[%s180 + $0x28] sm:$0xff] %v904
        %1945 = vst [vmem:[%s180 + $0x30] sm:$0xff] %v558
        %1946 = vst [vmem:[%s180 + $0x38] sm:$0xff] %v560
        %1947 = vst [vmem:[%s180 + $0x40] sm:$0xff] %v909
        %1948 = vst [vmem:[%s180 + $0x48] sm:$0xff] %v564
        %1949 = vst [vmem:[%s180 + $0x50] sm:$0xff] %v566
        %1950 = vst [vmem:[%s180 + $0x58] sm:$0xff] %v914
        %1951 = vst [vmem:[%s180 + $0x60] sm:$0xff] %v570
        %1952 = vst [vmem:[%s180 + $0x68] sm:$0xff] %v572
        %1953 = vst [vmem:[%s180 + $0x70] sm:$0xff] %v919
        %1954 = vst [vmem:[%s180 + $0x78] sm:$0xff] %v576
        %1955 = vst [vmem:[%s180 + $0x80] sm:$0xff] %v578
        %1956 = vst [vmem:[%s180 + $0x88] sm:$0xff] %v924
        %1957 = vst [vmem:[%s180 + $0x90] sm:$0xff] %v582
        %1958 = vst [vmem:[%s180 + $0x98] sm:$0xff] %v584
        %1959 = vst [vmem:[%s180 + $0xa0] sm:$0xff] %v929
        %1960 = vst [vmem:[%s180 + $0xa8] sm:$0xff] %v588
        %1961 = vst [vmem:[%s180 + $0xb0] sm:$0xff] %v590
        %1962 = vst [vmem:[%s180 + $0xb8] sm:$0xff] %v934
        %1963 = vst [vmem:[%s180 + $0xc0] sm:$0xff] %v594
        %1964 = vst [vmem:[%s180 + $0xc8] sm:$0xff] %v596
        %1965 = vst [vmem:[%s180 + $0xd0] sm:$0xff] %v939
        %1966 = vst [vmem:[%s180 + $0xd8] sm:$0xff] %v600
        %1967 = vst [vmem:[%s180 + $0xe0] sm:$0xff] %v602
        %1968 = vst [vmem:[%s180 + $0xe8] sm:$0xff] %v944
        %1969 = vst [vmem:[%s180 + $0xf0] sm:$0xff] %v606
        %1970 = vst [vmem:[%s180 + $0xf8] sm:$0xff] %v608
        %1971 = vst [vmem:[%s180 + $0x100] sm:$0xff] %v949
        %1972 = vst [vmem:[%s180 + $0x108] sm:$0xff] %v612
        %1973 = vst [vmem:[%s180 + $0x110] sm:$0xff] %v614
        %1974 = vst [vmem:[%s180 + $0x118] sm:$0xff] %v954
        %1975 = vst [vmem:[%s180 + $0x120] sm:$0xff] %v618
        %1976 = vst [vmem:[%s180 + $0x128] sm:$0xff] %v620
        %1977 = vst [vmem:[%s180 + $0x130] sm:$0xff] %v959
        %1978 = vst [vmem:[%s180 + $0x138] sm:$0xff] %v624
        %1979 = vst [vmem:[%s180 + $0x140] sm:$0xff] %v626
        %1980 = vst [vmem:[%s180 + $0x148] sm:$0xff] %v964
        %1981 = vst [vmem:[%s180 + $0x150] sm:$0xff] %v630
        %1982 = vst [vmem:[%s180 + $0x158] sm:$0xff] %v632
        %1983 = vst [vmem:[%s180 + $0x160] sm:$0xff] %v969
        %1984 = vst [vmem:[%s180 + $0x168] sm:$0xff] %v636
        %1985 = vst [vmem:[%s180 + $0x170] sm:$0xff] %v638
        %1986 = vst [vmem:[%s180 + $0x178] sm:$0xff] %v974
        %1987 = vst [vmem:[%s180 + $0x180] sm:$0xff] %v642
        %1988 = vst [vmem:[%s180 + $0x188] sm:$0xff] %v644
        %1989 = vst [vmem:[%s180 + $0x190] sm:$0xff] %v979
        %1990 = vst [vmem:[%s180 + $0x198] sm:$0xff] %v648
        %1991 = vst [vmem:[%s180 + $0x1a0] sm:$0xff] %v650
        %1992 = vst [vmem:[%s180 + $0x1a8] sm:$0xff] %v984
        %1993 = vst [vmem:[%s180 + $0x1b0] sm:$0xff] %v654
        %1994 = vst [vmem:[%s180 + $0x1b8] sm:$0xff] %v656
        %1995 = vst [vmem:[%s180 + $0x1c0] sm:$0xff] %v989
        %1996 = vst [vmem:[%s180 + $0x1c8] sm:$0xff] %v660
        %1997 = vst [vmem:[%s180 + $0x1d0] sm:$0xff] %v662
        %1998 = vst [vmem:[%s180 + $0x1d8] sm:$0xff] %v994
        %1999 = vst [vmem:[%s180 + $0x1e0] sm:$0xff] %v666
        %2000 = vst [vmem:[%s180 + $0x1e8] sm:$0xff] %v668
        %2001 = vst [vmem:[%s180 + $0x1f0] sm:$0xff] %v999
        %2002 = vst [vmem:[%s180 + $0x1f8] sm:$0xff] %v672
        %2003 = vst [vmem:[%s180 + $0x200] sm:$0xff] %v674
        %2004 = vst [vmem:[%s180 + $0x208] sm:$0xff] %v1004
        %2005 = vst [vmem:[%s180 + $0x210] sm:$0xff] %v678
        %2006 = vst [vmem:[%s180 + $0x218] sm:$0xff] %v680
        %2007 = vst [vmem:[%s180 + $0x220] sm:$0xff] %v1009
        %2008 = vst [vmem:[%s180 + $0x228] sm:$0xff] %v684
        %2009 = vst [vmem:[%s180 + $0x230] sm:$0xff] %v686
        %2010 = vst [vmem:[%s180 + $0x238] sm:$0xff] %v1014
        %2011 = vst [vmem:[%s180 + $0x240] sm:$0xff] %v690
        %2012 = vst [vmem:[%s180 + $0x248] sm:$0xff] %v692
        %2013 = vst [vmem:[%s180 + $0x250] sm:$0xff] %v1019
        %2014 = vst [vmem:[%s180 + $0x258] sm:$0xff] %v696
        %2015 = vst [vmem:[%s180 + $0x260] sm:$0xff] %v698
        %2016 = vst [vmem:[%s180 + $0x268] sm:$0xff] %v1024
        %2017 = vst [vmem:[%s180 + $0x270] sm:$0xff] %v702
        %2018 = vst [vmem:[%s180 + $0x278] sm:$0xff] %v704
        %2019 = vst [vmem:[%s180 + $0x280] sm:$0xff] %v1029
        %2020 = vst [vmem:[%s180 + $0x288] sm:$0xff] %v708
        %2021 = vst [vmem:[%s180 + $0x290] sm:$0xff] %v710
        %2022 = vst [vmem:[%s180 + $0x298] sm:$0xff] %v1034
        %2023 = vst [vmem:[%s180 + $0x2a0] sm:$0xff] %v714
        %2024 = vst [vmem:[%s180 + $0x2a8] sm:$0xff] %v716
        %2025 = vst [vmem:[%s180 + $0x2b0] sm:$0xff] %v1039
        %2026 = vst [vmem:[%s180 + $0x2b8] sm:$0xff] %v720
        %2027 = vst [vmem:[%s180 + $0x2c0] sm:$0xff] %v722
        %2028 = vst [vmem:[%s180 + $0x2c8] sm:$0xff] %v1044
        %2029 = vst [vmem:[%s180 + $0x2d0] sm:$0xff] %v726
        %2030 = vst [vmem:[%s180 + $0x2d8] sm:$0xff] %v728
        %2031 = vst [vmem:[%s180 + $0x2e0] sm:$0xff] %v1049
        %2032 = vst [vmem:[%s180 + $0x2e8] sm:$0xff] %v732
        %2033 = vst [vmem:[%s180 + $0x2f0] sm:$0xff] %v734
        %2034 = vst [vmem:[%s180 + $0x2f8] sm:$0xff] %v1054
        %2035 = vst [vmem:[%s180 + $0x300] sm:$0xff] %v738
        %2036 = vst [vmem:[%s180 + $0x308] sm:$0xff] %v740
        %2037 = vst [vmem:[%s180 + $0x310] sm:$0xff] %v1059
        %2038 = vst [vmem:[%s180 + $0x318] sm:$0xff] %v744
        %2039 = vst [vmem:[%s180 + $0x320] sm:$0xff] %v746
        %2040 = vst [vmem:[%s180 + $0x328] sm:$0xff] %v1064
        %2041 = vst [vmem:[%s180 + $0x330] sm:$0xff] %v750
        %2042 = vst [vmem:[%s180 + $0x338] sm:$0xff] %v752
        %2043 = vst [vmem:[%s180 + $0x340] sm:$0xff] %v1069
        %2044 = vst [vmem:[%s180 + $0x348] sm:$0xff] %v756
        %2045 = vst [vmem:[%s180 + $0x350] sm:$0xff] %v758
        %2046 = vst [vmem:[%s180 + $0x358] sm:$0xff] %v1074
        %2047 = vst [vmem:[%s180 + $0x360] sm:$0xff] %v762
        %2048 = vst [vmem:[%s180 + $0x368] sm:$0xff] %v764
        %2049 = vst [vmem:[%s180 + $0x370] sm:$0xff] %v1079
        %2050 = vst [vmem:[%s180 + $0x378] sm:$0xff] %v768
        %2051 = vst [vmem:[%s180 + $0x380] sm:$0xff] %v770
        %2052 = vst [vmem:[%s180 + $0x388] sm:$0xff] %v1084
        %2053 = vst [vmem:[%s180 + $0x390] sm:$0xff] %v774
        %2054 = vst [vmem:[%s180 + $0x398] sm:$0xff] %v776
        %2055 = vst [vmem:[%s180 + $0x3a0] sm:$0xff] %v1089
        %2056 = vst [vmem:[%s180 + $0x3a8] sm:$0xff] %v780
        %2057 = vst [vmem:[%s180 + $0x3b0] sm:$0xff] %v782
        %2058 = vst [vmem:[%s180 + $0x3b8] sm:$0xff] %v1094
        %2059 = vst [vmem:[%s180 + $0x3c0] sm:$0xff] %v786
        %2060 = vst [vmem:[%s180 + $0x3c8] sm:$0xff] %v788
        %2061 = vst [vmem:[%s180 + $0x3d0] sm:$0xff] %v1099
        %2062 = vst [vmem:[%s180 + $0x3d8] sm:$0xff] %v792
        %2063 = vst [vmem:[%s180 + $0x3e0] sm:$0xff] %v794
        %2064 = vst [vmem:[%s180 + $0x3e8] sm:$0xff] %v1104
        %2065 = vst [vmem:[%s180 + $0x3f0] sm:$0xff] %v798
        %2066 = vst [vmem:[%s180 + $0x3f8] sm:$0xff] %v800
        %2067 = vst [vmem:[%s180 + $0x400] sm:$0xff] %v1109
        %2068 = vst [vmem:[%s180 + $0x408] sm:$0xff] %v804
        %2069 = vst [vmem:[%s180 + $0x410] sm:$0xff] %v806
        %2070 = vst [vmem:[%s180 + $0x418] sm:$0xff] %v1114
        %2071 = vst [vmem:[%s180 + $0x420] sm:$0xff] %v810
        %2072 = vst [vmem:[%s180 + $0x428] sm:$0xff] %v812
        %2073 = vst [vmem:[%s180 + $0x430] sm:$0xff] %v1119
        %2074 = vst [vmem:[%s180 + $0x438] sm:$0xff] %v816
        %2075 = vst [vmem:[%s180 + $0x440] sm:$0xff] %v818
        %2076 = vst [vmem:[%s180 + $0x448] sm:$0xff] %v1124
        %2077 = vst [vmem:[%s180 + $0x450] sm:$0xff] %v822
        %2078 = vst [vmem:[%s180 + $0x458] sm:$0xff] %v824
        %2079 = vst [vmem:[%s180 + $0x460] sm:$0xff] %v1129
        %2080 = vst [vmem:[%s180 + $0x468] sm:$0xff] %v828
        %2081 = vst [vmem:[%s180 + $0x470] sm:$0xff] %v830
        %2082 = vst [vmem:[%s180 + $0x478] sm:$0xff] %v1134
        %2083 = vst [vmem:[%s180 + $0x480] sm:$0xff] %v1348
        %2084 = vst [vmem:[%s180 + $0x488] sm:$0xff] %v1350
        %2085 = vst [vmem:[%s180 + $0x490] sm:$0xff] %v1701
        %2086 = vst [vmem:[%s180 + $0x498] sm:$0xff] %v1354
        %2087 = vst [vmem:[%s180 + $0x4a0] sm:$0xff] %v1356
        %2088 = vst [vmem:[%s180 + $0x4a8] sm:$0xff] %v1706
        %2089 = vst [vmem:[%s180 + $0x4b0] sm:$0xff] %v1360
        %2090 = vst [vmem:[%s180 + $0x4b8] sm:$0xff] %v1362
        %2091 = vst [vmem:[%s180 + $0x4c0] sm:$0xff] %v1711
        %2092 = vst [vmem:[%s180 + $0x4c8] sm:$0xff] %v1366
        %2093 = vst [vmem:[%s180 + $0x4d0] sm:$0xff] %v1368
        %2094 = vst [vmem:[%s180 + $0x4d8] sm:$0xff] %v1716
        %2095 = vst [vmem:[%s180 + $0x4e0] sm:$0xff] %v1372
        %2096 = vst [vmem:[%s180 + $0x4e8] sm:$0xff] %v1374
        %2097 = vst [vmem:[%s180 + $0x4f0] sm:$0xff] %v1721
        %2098 = vst [vmem:[%s180 + $0x4f8] sm:$0xff] %v1378
        %2099 = vst [vmem:[%s180 + $0x500] sm:$0xff] %v1380
        %2100 = vst [vmem:[%s180 + $0x508] sm:$0xff] %v1726
        %2101 = vst [vmem:[%s180 + $0x510] sm:$0xff] %v1384
        %2102 = vst [vmem:[%s180 + $0x518] sm:$0xff] %v1386
        %2103 = vst [vmem:[%s180 + $0x520] sm:$0xff] %v1731
        %2104 = vst [vmem:[%s180 + $0x528] sm:$0xff] %v1390
        %2105 = vst [vmem:[%s180 + $0x530] sm:$0xff] %v1392
        %2106 = vst [vmem:[%s180 + $0x538] sm:$0xff] %v1736
        %2107 = vst [vmem:[%s180 + $0x540] sm:$0xff] %v1396
        %2108 = vst [vmem:[%s180 + $0x548] sm:$0xff] %v1398
        %2109 = vst [vmem:[%s180 + $0x550] sm:$0xff] %v1741
        %2110 = vst [vmem:[%s180 + $0x558] sm:$0xff] %v1402
        %2111 = vst [vmem:[%s180 + $0x560] sm:$0xff] %v1404
        %2112 = vst [vmem:[%s180 + $0x568] sm:$0xff] %v1746
        %2113 = vst [vmem:[%s180 + $0x570] sm:$0xff] %v1408
        %2114 = vst [vmem:[%s180 + $0x578] sm:$0xff] %v1410
        %2115 = vst [vmem:[%s180 + $0x580] sm:$0xff] %v1751
        %2116 = vst [vmem:[%s180 + $0x588] sm:$0xff] %v1414
        %2117 = vst [vmem:[%s180 + $0x590] sm:$0xff] %v1416
        %2118 = vst [vmem:[%s180 + $0x598] sm:$0xff] %v1756
        %2119 = vst [vmem:[%s180 + $0x5a0] sm:$0xff] %v1420
        %2120 = vst [vmem:[%s180 + $0x5a8] sm:$0xff] %v1422
        %2121 = vst [vmem:[%s180 + $0x5b0] sm:$0xff] %v1761
        %2122 = vst [vmem:[%s180 + $0x5b8] sm:$0xff] %v1426
        %2123 = vst [vmem:[%s180 + $0x5c0] sm:$0xff] %v1428
        %2124 = vst [vmem:[%s180 + $0x5c8] sm:$0xff] %v1766
        %2125 = vst [vmem:[%s180 + $0x5d0] sm:$0xff] %v1432
        %2126 = vst [vmem:[%s180 + $0x5d8] sm:$0xff] %v1434
        %2127 = vst [vmem:[%s180 + $0x5e0] sm:$0xff] %v1771
        %2128 = vst [vmem:[%s180 + $0x5e8] sm:$0xff] %v1438
        %2129 = vst [vmem:[%s180 + $0x5f0] sm:$0xff] %v1440
        %2130 = vst [vmem:[%s180 + $0x5f8] sm:$0xff] %v1776
        %2131 = vst [vmem:[%s180 + $0x600] sm:$0xff] %v1444
        %2132 = vst [vmem:[%s180 + $0x608] sm:$0xff] %v1446
        %2133 = vst [vmem:[%s180 + $0x610] sm:$0xff] %v1781
        %2134 = vst [vmem:[%s180 + $0x618] sm:$0xff] %v1450
        %2135 = vst [vmem:[%s180 + $0x620] sm:$0xff] %v1452
        %2136 = vst [vmem:[%s180 + $0x628] sm:$0xff] %v1786
        %2137 = vst [vmem:[%s180 + $0x630] sm:$0xff] %v1456
        %2138 = vst [vmem:[%s180 + $0x638] sm:$0xff] %v1458
        %2139 = vst [vmem:[%s180 + $0x640] sm:$0xff] %v1791
        %2140 = vst [vmem:[%s180 + $0x648] sm:$0xff] %v1462
        %2141 = vst [vmem:[%s180 + $0x650] sm:$0xff] %v1464
        %2142 = vst [vmem:[%s180 + $0x658] sm:$0xff] %v1796
        %2143 = vst [vmem:[%s180 + $0x660] sm:$0xff] %v1468
        %2144 = vst [vmem:[%s180 + $0x668] sm:$0xff] %v1470
        %2145 = vst [vmem:[%s180 + $0x670] sm:$0xff] %v1801
        %2146 = vst [vmem:[%s180 + $0x678] sm:$0xff] %v1474
        %2147 = vst [vmem:[%s180 + $0x680] sm:$0xff] %v1476
        %2148 = vst [vmem:[%s180 + $0x688] sm:$0xff] %v1806
        %2149 = vst [vmem:[%s180 + $0x690] sm:$0xff] %v1480
        %2150 = vst [vmem:[%s180 + $0x698] sm:$0xff] %v1482
        %2151 = vst [vmem:[%s180 + $0x6a0] sm:$0xff] %v1811
        %2152 = vst [vmem:[%s180 + $0x6a8] sm:$0xff] %v1486
        %2153 = vst [vmem:[%s180 + $0x6b0] sm:$0xff] %v1488
        %2154 = vst [vmem:[%s180 + $0x6b8] sm:$0xff] %v1816
        %2155 = vst [vmem:[%s180 + $0x6c0] sm:$0xff] %v1492
        %2156 = vst [vmem:[%s180 + $0x6c8] sm:$0xff] %v1494
        %2157 = vst [vmem:[%s180 + $0x6d0] sm:$0xff] %v1821
        %2158 = vst [vmem:[%s180 + $0x6d8] sm:$0xff] %v1498
        %2159 = vst [vmem:[%s180 + $0x6e0] sm:$0xff] %v1500
        %2160 = vst [vmem:[%s180 + $0x6e8] sm:$0xff] %v1826
        %2161 = vst [vmem:[%s180 + $0x6f0] sm:$0xff] %v1504
        %2162 = vst [vmem:[%s180 + $0x6f8] sm:$0xff] %v1506
        %2163 = vst [vmem:[%s180 + $0x700] sm:$0xff] %v1831
        %2164 = vst [vmem:[%s180 + $0x708] sm:$0xff] %v1510
        %2165 = vst [vmem:[%s180 + $0x710] sm:$0xff] %v1512
        %2166 = vst [vmem:[%s180 + $0x718] sm:$0xff] %v1836
        %2167 = vst [vmem:[%s180 + $0x720] sm:$0xff] %v1516
        %2168 = vst [vmem:[%s180 + $0x728] sm:$0xff] %v1518
        %2169 = vst [vmem:[%s180 + $0x730] sm:$0xff] %v1841
        %2170 = vst [vmem:[%s180 + $0x738] sm:$0xff] %v1522
        %2171 = vst [vmem:[%s180 + $0x740] sm:$0xff] %v1524
        %2172 = vst [vmem:[%s180 + $0x748] sm:$0xff] %v1846
        %2173 = vst [vmem:[%s180 + $0x750] sm:$0xff] %v1528
        %2174 = vst [vmem:[%s180 + $0x758] sm:$0xff] %v1530
        %2175 = vst [vmem:[%s180 + $0x760] sm:$0xff] %v1851
        %2176 = vst [vmem:[%s180 + $0x768] sm:$0xff] %v1534
        %2177 = vst [vmem:[%s180 + $0x770] sm:$0xff] %v1536
        %2178 = vst [vmem:[%s180 + $0x778] sm:$0xff] %v1856
        %2179 = vst [vmem:[%s180 + $0x780] sm:$0xff] %v1540
        %2180 = vst [vmem:[%s180 + $0x788] sm:$0xff] %v1542
        %2181 = vst [vmem:[%s180 + $0x790] sm:$0xff] %v1861
        %2182 = vst [vmem:[%s180 + $0x798] sm:$0xff] %v1546
        %2183 = vst [vmem:[%s180 + $0x7a0] sm:$0xff] %v1548
        %2184 = vst [vmem:[%s180 + $0x7a8] sm:$0xff] %v1866
        %2185 = vst [vmem:[%s180 + $0x7b0] sm:$0xff] %v1552
        %2186 = vst [vmem:[%s180 + $0x7b8] sm:$0xff] %v1554
        %2187 = vst [vmem:[%s180 + $0x7c0] sm:$0xff] %v1871
        %2188 = vst [vmem:[%s180 + $0x7c8] sm:$0xff] %v1558
        %2189 = vst [vmem:[%s180 + $0x7d0] sm:$0xff] %v1560
        %2190 = vst [vmem:[%s180 + $0x7d8] sm:$0xff] %v1876
        %2191 = vst [vmem:[%s180 + $0x7e0] sm:$0xff] %v1564
        %2192 = vst [vmem:[%s180 + $0x7e8] sm:$0xff] %v1566
        %2193 = vst [vmem:[%s180 + $0x7f0] sm:$0xff] %v1881
        %2194 = vst [vmem:[%s180 + $0x7f8] sm:$0xff] %v1570
        %2195 = vst [vmem:[%s180 + $0x800] sm:$0xff] %v1572
        %2196 = vst [vmem:[%s180 + $0x808] sm:$0xff] %v1886
        %2197 = vst [vmem:[%s180 + $0x810] sm:$0xff] %v1576
        %2198 = vst [vmem:[%s180 + $0x818] sm:$0xff] %v1578
        %2199 = vst [vmem:[%s180 + $0x820] sm:$0xff] %v1891
        %2200 = vst [vmem:[%s180 + $0x828] sm:$0xff] %v1582
        %2201 = vst [vmem:[%s180 + $0x830] sm:$0xff] %v1584
        %2202 = vst [vmem:[%s180 + $0x838] sm:$0xff] %v1896
        %2203 = vst [vmem:[%s180 + $0x840] sm:$0xff] %v1588
        %2204 = vst [vmem:[%s180 + $0x848] sm:$0xff] %v1590
        %2205 = vst [vmem:[%s180 + $0x850] sm:$0xff] %v1901
        %2206 = vst [vmem:[%s180 + $0x858] sm:$0xff] %v1594
        %2207 = vst [vmem:[%s180 + $0x860] sm:$0xff] %v1596
        %2208 = vst [vmem:[%s180 + $0x868] sm:$0xff] %v1906
        %2209 = vst [vmem:[%s180 + $0x870] sm:$0xff] %v1600
        %2210 = vst [vmem:[%s180 + $0x878] sm:$0xff] %v1602
        %2211 = vst [vmem:[%s180 + $0x880] sm:$0xff] %v1911
        %2212 = vst [vmem:[%s180 + $0x888] sm:$0xff] %v1606
        %2213 = vst [vmem:[%s180 + $0x890] sm:$0xff] %v1608
        %2214 = vst [vmem:[%s180 + $0x898] sm:$0xff] %v1916
        %2215 = vst [vmem:[%s180 + $0x8a0] sm:$0xff] %v1612
        %2216 = vst [vmem:[%s180 + $0x8a8] sm:$0xff] %v1614
        %2217 = vst [vmem:[%s180 + $0x8b0] sm:$0xff] %v1921
        %2218 = vst [vmem:[%s180 + $0x8b8] sm:$0xff] %v1618
        %2219 = vst [vmem:[%s180 + $0x8c0] sm:$0xff] %v1620
        %2220 = vst [vmem:[%s180 + $0x8c8] sm:$0xff] %v1926
        %2221 = vst [vmem:[%s180 + $0x8d0] sm:$0xff] %v1624
        %2222 = vst [vmem:[%s180 + $0x8d8] sm:$0xff] %v1626
        %2223 = vst [vmem:[%s180 + $0x8e0] sm:$0xff] %v1931
        %2224 = vst [vmem:[%s180 + $0x8e8] sm:$0xff] %v1630
        %2225 = vst [vmem:[%s180 + $0x8f0] sm:$0xff] %v1632
        %2226 = vst [vmem:[%s180 + $0x8f8] sm:$0xff] %v1936
        %s2227 = sand.u32 %s79, 1
        %s2228 = scalar_lea.sflag [#allocation4], %s2227
        %s2229 = sand.u32 %s79, 1
        %s2230 = smul.addr %s2229, 2304
        %s2231 = scalar_lea.vmem [#allocation5], %s2230
        // Predicated region
        $region33: #{tpu_custom_call.1} parent=27 // pred_check
          %p2232 = pneg %p89
        $region34: #{tpu_custom_call.1} parent=27 // pred_check_branch
          %2234 = sbr.rel (%p2232) target = $region36
        $region35: #{tpu_custom_call.1} parent=27 // pred_region
          %s2235 = smul.u32 2, %s19
          %s2237 = ssub.s32 36864, 36864
          %2238 = vsyncadd %s2228, %s2237
          %s2239 = smul.addr %s2235, 144
          %s2240 = smul.addr %s2239, 128
          %s2241 = scalar_lea.hbm %s2, %s2240
          %s2242 = sshll.u32 %s2231, 4
          %s2243 = int_to_ptr.vmem [resolvable:$true] %s2242
          %2248 = dma.vmem_to_hbm [thread:$0]  %s2243, 36864, %s2241, %s2228, 384, 384, 24
        $region36: #{tpu_custom_call.1} parent=27 // pred_fallthru
          _
      $region28: #{tpu_custom_call.1} parent=5 // pred_fallthru
        _
      %p2249 = scmp.le.s32.totalorder 2, %s14
      // Predicated region
      $region37: #{tpu_custom_call.1} parent=5 // pred_check
        %p2250 = pneg %p2249
      $region38: #{tpu_custom_call.1} parent=5 // pred_check_branch
        %2252 = sbr.rel (%p2250) target = $region40
      $region39: #{tpu_custom_call.1} parent=5 // pred_region
        %s2253 = ssub.s32 %s14, 2
        // Predicated region
        $region41: #{tpu_custom_call.1} parent=39 // pred_check
          %p2254 = pneg %p95
        $region42: #{tpu_custom_call.1} parent=39 // pred_check_branch
          %2256 = sbr.rel (%p2254) target = $region44
        $region43: #{tpu_custom_call.1} parent=39 // pred_region
          %s2257 = sand.u32 %s80, 1
          %s2258 = scalar_lea.sflag [#allocation4], %s2257
          %s2259 = sand.u32 %s80, 1
          %s2260 = smul.addr %s2259, 2304
          %s2261 = scalar_lea.vmem [#allocation5], %s2260
          %2262 = dma.done %s2258, 36864
        $region44: #{tpu_custom_call.1} parent=39 // pred_fallthru
          _
      $region40: #{tpu_custom_call.1} parent=5 // pred_fallthru
        _
    $region6: #{tpu_custom_call.1} parent=1 // loop_footer
      %s18 = sadd.s32 1, %s14
    $region7: #{tpu_custom_call.1} parent=1 // loop_footer_branch
      %13 = sbr.rel target = $region3
    $region8: #{tpu_custom_call.1} parent=1 // loop_exit
      _
    %2263 = vsyncpa [#allocation3], 1
    %s2264 = scalar_lea.sflag [#allocation3], 1
    %2265 = vsyncpa %s2264, 1
    %2266 = vsyncpa [#allocation4], 1
    %s2267 = scalar_lea.sflag [#allocation4], 1
    %2268 = vsyncpa %s2267, 1

</llo_original>
